<compile_context>
chip_gen: v6e
topology: v6e:2x2x1
jax: 0.10.0
libtpu: 0.0.40
codegen_flags: <defaults>
</compile_context>

<pallas_src>
import functools

import jax
import jax.numpy as jnp
import numpy as np
from jax.experimental import pallas as pl
from jax.experimental.pallas import tpu as pltpu


# --------------------------------------------------------------------------------------
# Kernel
# --------------------------------------------------------------------------------------
def _bottleneck_kernel(xl_ref, xa_ref, xr_ref, w1r_ref, w2_ref, w3_ref,
                       b1_ref, b2_ref, b3_ref, br_ref, o_ref, h1_scr, *,
                       tl, halo, med_p, l_valid, mask_tail, l_axis, cdt):
    i = pl.program_id(l_axis)

    w1r = w1r_ref[...]                                       # (cin_p, med_p + cout_p)
    b1 = b1_ref[...]                                         # (1, med_p)

    # ---- conv1 (BN folded) fused with the shortcut conv on the output-aligned tile ----
    fused = jnp.dot(xa_ref[0], w1r, preferred_element_type=jnp.float32)
    h1 = jnp.maximum(fused[:, :med_p] + b1, 0.0)             # (tl, med_p)
    sc = fused[:, med_p:] + br_ref[...]                      # (tl, cout_p), no row shift

    # Round-up padding rows (only exist when nt*tl > L) must contribute exact zeros
    # to conv2; interior grids skip this entirely (static gate).
    if mask_tail:
        gid = jax.lax.broadcasted_iota(jnp.int32, (tl, 1), 0) + i * tl
        h1 = jnp.where(gid < l_valid, h1, 0.0)

    # ---- conv1 on the single halo row needed on each side (conv2 k=3 neighbours) ----
    # Only the conv1 columns of the fused weight are used for halo rows.
    w1 = w1r[:, :med_p]
    hl = jnp.dot(xl_ref[0], w1, preferred_element_type=jnp.float32)[halo - 1:halo]
    hr = jnp.dot(xr_ref[0], w1, preferred_element_type=jnp.float32)[0:1]
    hl = jnp.where(i * tl >= 1, jnp.maximum(hl + b1, 0.0), 0.0)          # global row i*tl-1
    hr = jnp.where((i + 1) * tl < l_valid, jnp.maximum(hr + b1, 0.0), 0.0)  # global row (i+1)*tl

    # ---- stage h1 (+ halo rows) once in VMEM scratch; taps read shifted ref-slices ----
    h1_scr[halo:halo + tl, :] = h1.astype(cdt)
    h1_scr[halo - 1:halo, :] = hl.astype(cdt)
    h1_scr[halo + tl:halo + tl + 1, :] = hr.astype(cdt)

    # conv2 (k=3, pad=1): three K=med_p matmuls accumulated in f32.
    h2 = jnp.dot(h1_scr[halo:halo + tl, :], w2_ref[1], preferred_element_type=jnp.float32)
    h2 = h2 + jnp.dot(h1_scr[halo - 1:halo - 1 + tl, :], w2_ref[0],
                      preferred_element_type=jnp.float32)
    h2 = h2 + jnp.dot(h1_scr[halo + 1:halo + 1 + tl, :], w2_ref[2],
                      preferred_element_type=jnp.float32)
    h2 = jnp.maximum(h2 + b2_ref[...], 0.0)                  # (tl, med_p)

    # conv3 (k=1) + ReLU.  Dropout(0.2) is identity at inference.
    h3 = jnp.dot(h2.astype(cdt), w3_ref[...], preferred_element_type=jnp.float32)
    h3 = jnp.maximum(h3 + b3_ref[...], 0.0)                  # (tl, cout_p)
    # TODO(synk): training-mode Dropout would need pltpu.prng_seed/prng_random_bits masking.

    o_ref[0] = (h3 + sc).astype(o_ref.dtype)


# --------------------------------------------------------------------------------------
# Wrapper
# --------------------------------------------------------------------------------------
def _round_up(v, m):
    return (v + m - 1) // m * m


def _pad2(a, r, c):
    return jnp.pad(a, ((0, r - a.shape[0]), (0, c - a.shape[1])))


def _fold_bn(conv_bias, gamma, beta, mean, var, eps=1e-5):
    s = gamma / jnp.sqrt(var + eps)
    return s, (conv_bias - mean) * s + beta


_VMEM_BUDGET = 36 * 1024 * 1024          # conservative: fits v7x 64 MiB physical VMEM


def _vmem_bytes(tl, halo, cin_p, med_p, cout_p, in_isz, out_isz):
    x_io = 2 * (tl + 2 * halo) * cin_p * in_isz                      # double-buffered x windows
    o_io = 2 * tl * cout_p * out_isz                                 # double-buffered output
    w = 2 * (cin_p * (med_p + cout_p) + 3 * med_p * med_p + med_p * cout_p) * in_isz
    scr = (tl + 2 * halo) * med_p * in_isz                           # h1 staging scratch
    tmp = tl * (2 * med_p + 2 * cout_p) * 4 + tl * med_p * 4         # live f32 temporaries
    return x_io + o_io + w + scr + tmp


def _bottleneck_forward(x, p, downsample=False, tile_l=1024,
                        compute_dtype=jnp.float32, out_dtype=None):
    """x: (N, Cin, L) float32 (PyTorch NCL). Returns (N, Cout, Lout)."""
    stride = 2 if downsample else 1
    N, Cin, _ = x.shape
    Med = p['w1'].shape[0]
    Cout = p['w3'].shape[0]
    out_dtype = x.dtype if out_dtype is None else out_dtype
    cdt = compute_dtype

    cin_p = _round_up(Cin, 128)
    med_p = _round_up(Med, 128)
    cout_p = _round_up(Cout, 128)

    isz = jnp.dtype(cdt).itemsize
    osz = jnp.dtype(out_dtype).itemsize
    halo = max(8, 32 // isz)                 # sublane packing: 8 (f32) / 16 (bf16) / 32 (8-bit)

    # NCL -> NLC, k=1 stride via row subsampling.
    # TODO(synk): for stacked Bottleneck layers keep activations in padded NLC between
    # layers (skip this transpose/pad and the output slice/transpose HBM relayouts).
    xs = jnp.transpose(x, (0, 2, 1))[:, ::stride, :]                 # (N, L, Cin)
    L = xs.shape[1]

    # L-tile size: multiple of the dtype's sublane packing, shrunk to fit the VMEM budget.
    tl = max(halo, min(_round_up(L, halo), _round_up(tile_l, halo)))
    while tl > halo and _vmem_bytes(tl, halo, cin_p, med_p, cout_p, isz, osz) > _VMEM_BUDGET:
        tl = max(halo, _round_up(tl // 2, halo))
    nt = -(-L // tl)
    mask_tail = (nt * tl) > L

    # Channel pad to the 128-lane axis; trailing rows cover round-up + right halo.
    x_pad = jnp.pad(xs, ((0, 0), (0, nt * tl + halo - L), (0, cin_p - Cin))).astype(cdt)

    # ---- fold BN into conv weights / biases, pad channels, fuse conv1 + shortcut ----
    s1, b1 = _fold_bn(p['b1'], p['g1'], p['be1'], p['m1'], p['v1'])
    s2, b2 = _fold_bn(p['b2'], p['g2'], p['be2'], p['m2'], p['v2'])
    s3, b3 = _fold_bn(p['b3'], p['g3'], p['be3'], p['m3'], p['v3'])

    w1 = jnp.transpose(p['w1'][:, :, 0]) * s1[None, :]               # (Cin, Med)
    wr = jnp.transpose(p['wr'][:, :, 0])                             # (Cin, Cout)
    w1r = jnp.concatenate([_pad2(w1, cin_p, med_p), _pad2(wr, cin_p, cout_p)], axis=1)

    w2 = jnp.transpose(p['w2'], (2, 1, 0)) * s2[None, None, :]       # (3, Med, Med) [k, in, out]
    w2 = jnp.pad(w2, ((0, 0), (0, med_p - Med), (0, med_p - Med)))   # (3, med_p, med_p)

    w3 = _pad2(jnp.transpose(p['w3'][:, :, 0]) * s3[None, :], med_p, cout_p)

    pad1 = lambda v, c: jnp.pad(v, (0, c - v.shape[0])).reshape(1, c).astype(jnp.float32)
    b1v, b2v = pad1(b1, med_p), pad1(b2, med_p)
    b3v, brv = pad1(b3, cout_p), pad1(p['br'], cout_p)

    w1r, w2, w3 = w1r.astype(cdt), w2.astype(cdt), w3.astype(cdt)

    # ---- grid: put the larger parallel extent outermost (v7x 2-TC split) ----
    if N >= nt:
        grid, l_axis = (N, nt), 1
        gn = lambda a, b: a
        gi = lambda a, b: b
    else:
        grid, l_axis = (nt, N), 0
        gn = lambda a, b: b
        gi = lambda a, b: a

    r = tl // halo
    x_main_spec = pl.BlockSpec((1, tl, cin_p), lambda a, b: (gn(a, b), gi(a, b), 0))
    x_left_spec = pl.BlockSpec(
        (1, halo, cin_p), lambda a, b: (gn(a, b), jnp.maximum(gi(a, b) * r - 1, 0), 0))
    x_right_spec = pl.BlockSpec(
        (1, halo, cin_p), lambda a, b: (gn(a, b), (gi(a, b) + 1) * r, 0))
    out_spec = pl.BlockSpec((1, tl, cout_p), lambda a, b: (gn(a, b), gi(a, b), 0))

    def const(shape):
        return pl.BlockSpec(shape, lambda a, b, _nd=len(shape): (0,) * _nd)

    est = _vmem_bytes(tl, halo, cin_p, med_p, cout_p, isz, osz)
    vmem_limit = int(min(max(est * 5 // 4, 32 * 1024 * 1024), 50 * 1024 * 1024))

    kernel = functools.partial(
        _bottleneck_kernel, tl=tl, halo=halo, med_p=med_p, l_valid=L,
        mask_tail=mask_tail, l_axis=l_axis, cdt=cdt)

    out = pl.pallas_call(
        kernel,
        out_shape=jax.ShapeDtypeStruct((N, nt * tl, cout_p), out_dtype),
        grid=grid,
        in_specs=[
            x_left_spec,                         # left halo rows  [i*tl-halo, i*tl)
            x_main_spec,                         # main tile       [i*tl, i*tl+tl)
            x_right_spec,                        # right halo rows [(i+1)*tl, (i+1)*tl+halo)
            const((cin_p, med_p + cout_p)),      # [W1*s1 | Wr]
            const((3, med_p, med_p)),            # W2 taps, BN-folded
            const((med_p, cout_p)),              # W3, BN-folded
            const((1, med_p)),                   # b1 (BN-folded)
            const((1, med_p)),                   # b2
            const((1, cout_p)),                  # b3
            const((1, cout_p)),                  # shortcut bias
        ],
        out_specs=out_spec,
        scratch_shapes=[pltpu.VMEM((tl + 2 * halo, med_p), cdt)],
        compiler_params=pltpu.CompilerParams(
            dimension_semantics=("parallel", "parallel"),
            vmem_limit_bytes=vmem_limit),
    )(x_pad, x_pad, x_pad, w1r, w2, w3, b1v, b2v, b3v, brv)

    return jnp.transpose(out[:, :L, :Cout], (0, 2, 1)).astype(x.dtype)   # (N, Cout, Lout)


bottleneck_pallas = jax.jit(
    _bottleneck_forward,
    static_argnames=("downsample", "tile_l", "compute_dtype", "out_dtype"))


# --------------------------------------------------------------------------------------
# Plain-JAX reference (verification)
# --------------------------------------------------------------------------------------
def _conv1d_ref(x, w, b, stride=1, pad=0):
    N, C, Lin = x.shape
    O, _, K = w.shape
    xp = jnp.pad(x, ((0, 0), (0, 0), (pad, pad)))
    Lout = (Lin + 2 * pad - K) // stride + 1
    out = jnp.zeros((N, O, Lout), jnp.float32)
    for k in range(K):
        xs = xp[:, :, k: k + stride * (Lout - 1) + 1: stride]
        out = out + jnp.einsum('ncl,oc->nol', xs, w[:, :, k])
    return out + b[None, :, None]


def _bn_ref(x, g, be, m, v, eps=1e-5):
    return ((x - m[None, :, None]) / jnp.sqrt(v + eps)[None, :, None]
            * g[None, :, None] + be[None, :, None])


def bottleneck_ref(x, p, downsample=False):
    stride = 2 if downsample else 1
    h = jax.nn.relu(_bn_ref(_conv1d_ref(x, p['w1'], p['b1'], stride),
                            p['g1'], p['be1'], p['m1'], p['v1']))
    h = jax.nn.relu(_bn_ref(_conv1d_ref(h, p['w2'], p['b2'], 1, pad=1),
                            p['g2'], p['be2'], p['m2'], p['v2']))
    h = jax.nn.relu(_bn_ref(_conv1d_ref(h, p['w3'], p['b3'], 1),
                            p['g3'], p['be3'], p['m3'], p['v3']))
    sc = _conv1d_ref(x, p['wr'], p['br'], stride)
    return h + sc


def make_params(key, Cin, Med, Cout):
    ks = jax.random.split(key, 20)
    r = lambda k, shape, s=0.2: s * jax.random.normal(k, shape, dtype=jnp.float32)
    return {
        'w1': r(ks[0], (Med, Cin, 1)),  'b1': r(ks[1], (Med,)),
        'g1': 1.0 + r(ks[2], (Med,)),   'be1': r(ks[3], (Med,)),
        'm1': r(ks[4], (Med,)),         'v1': 1.0 + jnp.abs(r(ks[5], (Med,))),
        'w2': r(ks[6], (Med, Med, 3)),  'b2': r(ks[7], (Med,)),
        'g2': 1.0 + r(ks[8], (Med,)),   'be2': r(ks[9], (Med,)),
        'm2': r(ks[10], (Med,)),        'v2': 1.0 + jnp.abs(r(ks[11], (Med,))),
        'w3': r(ks[12], (Cout, Med, 1)), 'b3': r(ks[13], (Cout,)),
        'g3': 1.0 + r(ks[14], (Cout,)), 'be3': r(ks[15], (Cout,)),
        'm3': r(ks[16], (Cout,)),       'v3': 1.0 + jnp.abs(r(ks[17], (Cout,))),
        'wr': r(ks[18], (Cout, Cin, 1)), 'br': r(ks[19], (Cout,)),
    }


if __name__ == "__main__":
    key = jax.random.PRNGKey(0)
    kx, kp = jax.random.split(key)

    N, Cin, Med, Cout, L = 2, 4, 8, 16, 20
    x = jax.random.normal(kx, (N, Cin, L), dtype=jnp.float32)
    params = make_params(kp, Cin, Med, Cout)

    # f32, small L-tiles (tl=8 -> 3 tiles) to exercise the cross-tile conv2 halo + tail mask.
    out = jax.block_until_ready(bottleneck_pallas(x, params, downsample=False, tile_l=8))
    ref = bottleneck_ref(x, params, downsample=False)
    np.testing.assert_allclose(np.asarray(out), np.asarray(ref), rtol=1e-3, atol=1e-3)

    # f32, downsample=True (stride-2 path, single tile).
    out_ds = jax.block_until_ready(bottleneck_pallas(x, params, downsample=True))
    ref_ds = bottleneck_ref(x, params, downsample=True)
    np.testing.assert_allclose(np.asarray(out_ds), np.asarray(ref_ds), rtol=1e-3, atol=1e-3)

    # bf16 MXU path (16-row packing-aligned tiles/halo, f32 accumulate + f32 epilogue).
    out_bf = jax.block_until_ready(
        bottleneck_pallas(x, params, downsample=False, tile_l=16,
                          compute_dtype=jnp.bfloat16))
    np.testing.assert_allclose(np.asarray(out_bf), np.asarray(ref), rtol=5e-2, atol=5e-2)

    print("KERNEL_OK")
</pallas_src>

<mosaic_0001>
module attributes {stable_mosaic.version = 11 : i64} {
  func.func @_bottleneck_kernel(%arg0: i32, %arg1: i32, %arg2: memref<1x8x128xf32, #tpu.memory_space<vmem>>, %arg3: memref<1x8x128xf32, #tpu.memory_space<vmem>>, %arg4: memref<1x8x128xf32, #tpu.memory_space<vmem>>, %arg5: memref<128x256xf32, #tpu.memory_space<vmem>>, %arg6: memref<3x128x128xf32, #tpu.memory_space<vmem>>, %arg7: memref<128x128xf32, #tpu.memory_space<vmem>>, %arg8: memref<1x128xf32, #tpu.memory_space<vmem>>, %arg9: memref<1x128xf32, #tpu.memory_space<vmem>>, %arg10: memref<1x128xf32, #tpu.memory_space<vmem>>, %arg11: memref<1x128xf32, #tpu.memory_space<vmem>>, %arg12: memref<1x8x128xf32, #tpu.memory_space<vmem>>, %arg13: memref<24x128xf32, #tpu.memory_space<vmem>>) attributes {dimension_semantics = [#tpu.dimension_semantics<parallel>, #tpu.dimension_semantics<parallel>], iteration_bounds = array<i64: 3, 2>, scalar_prefetch = 0 : i64, scratch_operands = 1 : i64, tpu.core_type = #tpu.core_type<tc>, window_params = [{transform_indices = @transform_0, window_bounds = array<i64: 1, 8, 128>}, {transform_indices = @transform_1, window_bounds = array<i64: 1, 8, 128>}, {transform_indices = @transform_2, window_bounds = array<i64: 1, 8, 128>}, {pipeline_mode = #tpu.pipeline_mode<synchronous>, transform_indices = @transform_3, window_bounds = array<i64: 128, 256>}, {pipeline_mode = #tpu.pipeline_mode<synchronous>, transform_indices = @transform_4, window_bounds = array<i64: 3, 128, 128>}, {pipeline_mode = #tpu.pipeline_mode<synchronous>, transform_indices = @transform_5, window_bounds = array<i64: 128, 128>}, {pipeline_mode = #tpu.pipeline_mode<synchronous>, transform_indices = @transform_6, window_bounds = array<i64: 1, 128>}, {pipeline_mode = #tpu.pipeline_mode<synchronous>, transform_indices = @transform_7, window_bounds = array<i64: 1, 128>}, {pipeline_mode = #tpu.pipeline_mode<synchronous>, transform_indices = @transform_8, window_bounds = array<i64: 1, 128>}, {pipeline_mode = #tpu.pipeline_mode<synchronous>, transform_indices = @transform_9, window_bounds = array<i64: 1, 128>}, {transform_indices = @transform_10, window_bounds = array<i64: 1, 8, 128>}]} {
    %c0 = arith.constant 0 : index
    %c0_0 = arith.constant 0 : index
    %0 = vector.load %arg5[%c0, %c0_0] : memref<128x256xf32, #tpu.memory_space<vmem>>, vector<128x256xf32>
    %c0_1 = arith.constant 0 : index
    %c0_2 = arith.constant 0 : index
    %1 = vector.load %arg8[%c0_1, %c0_2] : memref<1x128xf32, #tpu.memory_space<vmem>>, vector<1x128xf32>
    %c0_3 = arith.constant 0 : index
    %c0_4 = arith.constant 0 : index
    %c0_5 = arith.constant 0 : index
    %2 = vector.load %arg3[%c0_3, %c0_4, %c0_5] : memref<1x8x128xf32, #tpu.memory_space<vmem>>, vector<1x8x128xf32>
    %3 = vector.shape_cast %2 : vector<1x8x128xf32> to vector<8x128xf32>
    %cst = arith.constant dense<0.000000e+00> : vector<8x256xf32>
    %4 = tpu.matmul %3, %0, %cst {dimension_numbers = #tpu.dot_dimension_numbers<[1], [0], [0], [1], [0, 0, 1, 1], [], []>} : vector<8x128xf32>, vector<128x256xf32>, vector<8x256xf32> -> vector<8x256xf32>
    %5 = vector.extract_strided_slice %4 {offsets = [0, 0], sizes = [8, 128], strides = [1, 1]} : vector<8x256xf32> to vector<8x128xf32>
    %6 = vector.broadcast %1 : vector<1x128xf32> to vector<8x128xf32>
    %7 = arith.addf %5, %6 : vector<8x128xf32>
    %cst_6 = arith.constant 0.000000e+00 : f32
    %8 = vector.broadcast %cst_6 : f32 to vector<8x128xf32>
    %9 = arith.maximumf %7, %8 : vector<8x128xf32>
    %10 = vector.extract_strided_slice %4 {offsets = [0, 128], sizes = [8, 128], strides = [1, 1]} : vector<8x256xf32> to vector<8x128xf32>
    %c0_7 = arith.constant 0 : index
    %c0_8 = arith.constant 0 : index
    %11 = vector.load %arg11[%c0_7, %c0_8] : memref<1x128xf32, #tpu.memory_space<vmem>>, vector<1x128xf32>
    %12 = vector.broadcast %11 : vector<1x128xf32> to vector<8x128xf32>
    %13 = arith.addf %10, %12 : vector<8x128xf32>
    %14 = tpu.iota {dimensions = array<i32: 0>} : vector<8x1xi32>
    %c8_i32 = arith.constant 8 : i32
    %15 = arith.muli %arg0, %c8_i32 : i32
    %16 = vector.broadcast %15 : i32 to vector<8x1xi32>
    %17 = arith.addi %14, %16 : vector<8x1xi32>
    %c20_i32 = arith.constant 20 : i32
    %18 = vector.broadcast %c20_i32 : i32 to vector<8x1xi32>
    %19 = arith.cmpi slt, %17, %18 : vector<8x1xi32>
    %cst_9 = arith.constant 0.000000e+00 : f32
    %20 = vector.shape_cast %19 : vector<8x1xi1> to vector<8x1xi1>
    %21 = vector.broadcast %20 : vector<8x1xi1> to vector<8x128xi1>
    %22 = vector.broadcast %cst_9 : f32 to vector<8x128xf32>
    %23 = arith.select %21, %9, %22 : vector<8x128xi1>, vector<8x128xf32>
    %24 = vector.extract_strided_slice %0 {offsets = [0, 0], sizes = [128, 128], strides = [1, 1]} : vector<128x256xf32> to vector<128x128xf32>
    %c0_10 = arith.constant 0 : index
    %c0_11 = arith.constant 0 : index
    %c0_12 = arith.constant 0 : index
    %25 = vector.load %arg2[%c0_10, %c0_11, %c0_12] : memref<1x8x128xf32, #tpu.memory_space<vmem>>, vector<1x8x128xf32>
    %26 = vector.shape_cast %25 : vector<1x8x128xf32> to vector<8x128xf32>
    %cst_13 = arith.constant dense<0.000000e+00> : vector<8x128xf32>
    %27 = tpu.matmul %26, %24, %cst_13 {dimension_numbers = #tpu.dot_dimension_numbers<[1], [0], [0], [1], [0, 0, 1, 1], [], []>} : vector<8x128xf32>, vector<128x128xf32>, vector<8x128xf32> -> vector<8x128xf32>
    %28 = vector.extract_strided_slice %27 {offsets = [7, 0], sizes = [1, 128], strides = [1, 1]} : vector<8x128xf32> to vector<1x128xf32>
    %c0_14 = arith.constant 0 : index
    %c0_15 = arith.constant 0 : index
    %c0_16 = arith.constant 0 : index
    %29 = vector.load %arg4[%c0_14, %c0_15, %c0_16] : memref<1x8x128xf32, #tpu.memory_space<vmem>>, vector<1x8x128xf32>
    %30 = vector.shape_cast %29 : vector<1x8x128xf32> to vector<8x128xf32>
    %cst_17 = arith.constant dense<0.000000e+00> : vector<8x128xf32>
    %31 = tpu.matmul %30, %24, %cst_17 {dimension_numbers = #tpu.dot_dimension_numbers<[1], [0], [0], [1], [0, 0, 1, 1], [], []>} : vector<8x128xf32>, vector<128x128xf32>, vector<8x128xf32> -> vector<8x128xf32>
    %32 = vector.extract_strided_slice %31 {offsets = [0, 0], sizes = [1, 128], strides = [1, 1]} : vector<8x128xf32> to vector<1x128xf32>
    %c8_i32_18 = arith.constant 8 : i32
    %33 = arith.muli %arg0, %c8_i32_18 : i32
    %c1_i32 = arith.constant 1 : i32
    %34 = arith.cmpi sge, %33, %c1_i32 : i32
    %35 = arith.addf %28, %1 : vector<1x128xf32>
    %cst_19 = arith.constant 0.000000e+00 : f32
    %36 = vector.broadcast %cst_19 : f32 to vector<1x128xf32>
    %37 = arith.maximumf %35, %36 : vector<1x128xf32>
    %cst_20 = arith.constant 0.000000e+00 : f32
    %38 = vector.broadcast %cst_20 : f32 to vector<1x128xf32>
    %39 = arith.select %34, %37, %38 : vector<1x128xf32>
    %c1_i32_21 = arith.constant 1 : i32
    %40 = arith.addi %arg0, %c1_i32_21 : i32
    %c8_i32_22 = arith.constant 8 : i32
    %41 = arith.muli %40, %c8_i32_22 : i32
    %c20_i32_23 = arith.constant 20 : i32
    %42 = arith.cmpi slt, %41, %c20_i32_23 : i32
    %43 = arith.addf %32, %1 : vector<1x128xf32>
    %cst_24 = arith.constant 0.000000e+00 : f32
    %44 = vector.broadcast %cst_24 : f32 to vector<1x128xf32>
    %45 = arith.maximumf %43, %44 : vector<1x128xf32>
    %cst_25 = arith.constant 0.000000e+00 : f32
    %46 = vector.broadcast %cst_25 : f32 to vector<1x128xf32>
    %47 = arith.select %42, %45, %46 : vector<1x128xf32>
    %c8 = arith.constant 8 : index
    %c0_26 = arith.constant 0 : index
    %48 = vector.load %arg13[%c8, %c0_26] : memref<24x128xf32, #tpu.memory_space<vmem>>, vector<8x128xf32>
    tpu.vector_store %arg13[%c8, %c0_26], %23 {strides = array<i32>} : memref<24x128xf32, #tpu.memory_space<vmem>>, vector<8x128xf32>,
    %c7 = arith.constant 7 : index
    %c0_27 = arith.constant 0 : index
    %49 = vector.load %arg13[%c7, %c0_27] : memref<24x128xf32, #tpu.memory_space<vmem>>, vector<1x128xf32>
    tpu.vector_store %arg13[%c7, %c0_27], %39 {strides = array<i32>} : memref<24x128xf32, #tpu.memory_space<vmem>>, vector<1x128xf32>,
    %c16 = arith.constant 16 : index
    %c0_28 = arith.constant 0 : index
    %50 = vector.load %arg13[%c16, %c0_28] : memref<24x128xf32, #tpu.memory_space<vmem>>, vector<1x128xf32>
    tpu.vector_store %arg13[%c16, %c0_28], %47 {strides = array<i32>} : memref<24x128xf32, #tpu.memory_space<vmem>>, vector<1x128xf32>,
    %c8_29 = arith.constant 8 : index
    %c0_30 = arith.constant 0 : index
    %51 = vector.load %arg13[%c8_29, %c0_30] : memref<24x128xf32, #tpu.memory_space<vmem>>, vector<8x128xf32>
    %c1 = arith.constant 1 : index
    %c0_31 = arith.constant 0 : index
    %c0_32 = arith.constant 0 : index
    %52 = vector.load %arg6[%c1, %c0_31, %c0_32] : memref<3x128x128xf32, #tpu.memory_space<vmem>>, vector<1x128x128xf32>
    %53 = vector.shape_cast %52 : vector<1x128x128xf32> to vector<128x128xf32>
    %cst_33 = arith.constant dense<0.000000e+00> : vector<8x128xf32>
    %54 = tpu.matmul %51, %53, %cst_33 {dimension_numbers = #tpu.dot_dimension_numbers<[1], [0], [0], [1], [0, 0, 1, 1], [], []>} : vector<8x128xf32>, vector<128x128xf32>, vector<8x128xf32> -> vector<8x128xf32>
    %c7_34 = arith.constant 7 : index
    %c0_35 = arith.constant 0 : index
    %55 = vector.load %arg13[%c7_34, %c0_35] : memref<24x128xf32, #tpu.memory_space<vmem>>, vector<8x128xf32>
    %c0_36 = arith.constant 0 : index
    %c0_37 = arith.constant 0 : index
    %c0_38 = arith.constant 0 : index
    %56 = vector.load %arg6[%c0_36, %c0_37, %c0_38] : memref<3x128x128xf32, #tpu.memory_space<vmem>>, vector<1x128x128xf32>
    %57 = vector.shape_cast %56 : vector<1x128x128xf32> to vector<128x128xf32>
    %cst_39 = arith.constant dense<0.000000e+00> : vector<8x128xf32>
    %58 = tpu.matmul %55, %57, %cst_39 {dimension_numbers = #tpu.dot_dimension_numbers<[1], [0], [0], [1], [0, 0, 1, 1], [], []>} : vector<8x128xf32>, vector<128x128xf32>, vector<8x128xf32> -> vector<8x128xf32>
    %59 = arith.addf %54, %58 : vector<8x128xf32>
    %c9 = arith.constant 9 : index
    %c0_40 = arith.constant 0 : index
    %60 = vector.load %arg13[%c9, %c0_40] : memref<24x128xf32, #tpu.memory_space<vmem>>, vector<8x128xf32>
    %c2 = arith.constant 2 : index
    %c0_41 = arith.constant 0 : index
    %c0_42 = arith.constant 0 : index
    %61 = vector.load %arg6[%c2, %c0_41, %c0_42] : memref<3x128x128xf32, #tpu.memory_space<vmem>>, vector<1x128x128xf32>
    %62 = vector.shape_cast %61 : vector<1x128x128xf32> to vector<128x128xf32>
    %cst_43 = arith.constant dense<0.000000e+00> : vector<8x128xf32>
    %63 = tpu.matmul %60, %62, %cst_43 {dimension_numbers = #tpu.dot_dimension_numbers<[1], [0], [0], [1], [0, 0, 1, 1], [], []>} : vector<8x128xf32>, vector<128x128xf32>, vector<8x128xf32> -> vector<8x128xf32>
    %64 = arith.addf %59, %63 : vector<8x128xf32>
    %c0_44 = arith.constant 0 : index
    %c0_45 = arith.constant 0 : index
    %65 = vector.load %arg9[%c0_44, %c0_45] : memref<1x128xf32, #tpu.memory_space<vmem>>, vector<1x128xf32>
    %66 = vector.broadcast %65 : vector<1x128xf32> to vector<8x128xf32>
    %67 = arith.addf %64, %66 : vector<8x128xf32>
    %cst_46 = arith.constant 0.000000e+00 : f32
    %68 = vector.broadcast %cst_46 : f32 to vector<8x128xf32>
    %69 = arith.maximumf %67, %68 : vector<8x128xf32>
    %c0_47 = arith.constant 0 : index
    %c0_48 = arith.constant 0 : index
    %70 = vector.load %arg7[%c0_47, %c0_48] : memref<128x128xf32, #tpu.memory_space<vmem>>, vector<128x128xf32>
    %cst_49 = arith.constant dense<0.000000e+00> : vector<8x128xf32>
    %71 = tpu.matmul %69, %70, %cst_49 {dimension_numbers = #tpu.dot_dimension_numbers<[1], [0], [0], [1], [0, 0, 1, 1], [], []>} : vector<8x128xf32>, vector<128x128xf32>, vector<8x128xf32> -> vector<8x128xf32>
    %c0_50 = arith.constant 0 : index
    %c0_51 = arith.constant 0 : index
    %72 = vector.load %arg10[%c0_50, %c0_51] : memref<1x128xf32, #tpu.memory_space<vmem>>, vector<1x128xf32>
    %73 = vector.broadcast %72 : vector<1x128xf32> to vector<8x128xf32>
    %74 = arith.addf %71, %73 : vector<8x128xf32>
    %cst_52 = arith.constant 0.000000e+00 : f32
    %75 = vector.broadcast %cst_52 : f32 to vector<8x128xf32>
    %76 = arith.maximumf %74, %75 : vector<8x128xf32>
    %77 = arith.addf %76, %13 : vector<8x128xf32>
    %c0_53 = arith.constant 0 : index
    %c0_54 = arith.constant 0 : index
    %c0_55 = arith.constant 0 : index
    %78 = vector.load %arg12[%c0_53, %c0_54, %c0_55] : memref<1x8x128xf32, #tpu.memory_space<vmem>>, vector<1x8x128xf32>
    %79 = vector.shape_cast %78 : vector<1x8x128xf32> to vector<8x128xf32>
    %80 = vector.shape_cast %77 : vector<8x128xf32> to vector<1x8x128xf32>
    tpu.vector_store %arg12[%c0_53, %c0_54, %c0_55], %80 {strides = array<i32>} : memref<1x8x128xf32, #tpu.memory_space<vmem>>, vector<1x8x128xf32>,
    return
  }
  func.func @transform_0(%arg0: i32, %arg1: i32) -> (i32, i32, i32) {
    %c1_i32 = arith.constant 1 : i32
    %0 = arith.muli %arg0, %c1_i32 : i32
    %c1_i32_0 = arith.constant 1 : i32
    %1 = arith.subi %0, %c1_i32_0 : i32
    %c0_i32 = arith.constant 0 : i32
    %2 = arith.maxsi %1, %c0_i32 : i32
    %c0_i32_1 = arith.constant 0 : i32
    %c0_i32_2 = arith.constant 0 : i32
    return %arg1, %2, %c0_i32_1 : i32, i32, i32
  }
  func.func @transform_1(%arg0: i32, %arg1: i32) -> (i32, i32, i32) {
    %c0_i32 = arith.constant 0 : i32
    %c0_i32_0 = arith.constant 0 : i32
    return %arg1, %arg0, %c0_i32 : i32, i32, i32
  }
  func.func @transform_2(%arg0: i32, %arg1: i32) -> (i32, i32, i32) {
    %c1_i32 = arith.constant 1 : i32
    %0 = arith.addi %arg0, %c1_i32 : i32
    %c1_i32_0 = arith.constant 1 : i32
    %1 = arith.muli %0, %c1_i32_0 : i32
    %c0_i32 = arith.constant 0 : i32
    %c0_i32_1 = arith.constant 0 : i32
    return %arg1, %1, %c0_i32 : i32, i32, i32
  }
  func.func @transform_3(%arg0: i32, %arg1: i32) -> (i32, i32) {
    %c0_i32 = arith.constant 0 : i32
    %c0_i32_0 = arith.constant 0 : i32
    %c0_i32_1 = arith.constant 0 : i32
    return %c0_i32, %c0_i32_0 : i32, i32
  }
  func.func @transform_4(%arg0: i32, %arg1: i32) -> (i32, i32, i32) {
    %c0_i32 = arith.constant 0 : i32
    %c0_i32_0 = arith.constant 0 : i32
    %c0_i32_1 = arith.constant 0 : i32
    %c0_i32_2 = arith.constant 0 : i32
    return %c0_i32, %c0_i32_0, %c0_i32_1 : i32, i32, i32
  }
  func.func @transform_5(%arg0: i32, %arg1: i32) -> (i32, i32) {
    %c0_i32 = arith.constant 0 : i32
    %c0_i32_0 = arith.constant 0 : i32
    %c0_i32_1 = arith.constant 0 : i32
    return %c0_i32, %c0_i32_0 : i32, i32
  }
  func.func @transform_6(%arg0: i32, %arg1: i32) -> (i32, i32) {
    %c0_i32 = arith.constant 0 : i32
    %c0_i32_0 = arith.constant 0 : i32
    %c0_i32_1 = arith.constant 0 : i32
    return %c0_i32, %c0_i32_0 : i32, i32
  }
  func.func @transform_7(%arg0: i32, %arg1: i32) -> (i32, i32) {
    %c0_i32 = arith.constant 0 : i32
    %c0_i32_0 = arith.constant 0 : i32
    %c0_i32_1 = arith.constant 0 : i32
    return %c0_i32, %c0_i32_0 : i32, i32
  }
  func.func @transform_8(%arg0: i32, %arg1: i32) -> (i32, i32) {
    %c0_i32 = arith.constant 0 : i32
    %c0_i32_0 = arith.constant 0 : i32
    %c0_i32_1 = arith.constant 0 : i32
    return %c0_i32, %c0_i32_0 : i32, i32
  }
  func.func @transform_9(%arg0: i32, %arg1: i32) -> (i32, i32) {
    %c0_i32 = arith.constant 0 : i32
    %c0_i32_0 = arith.constant 0 : i32
    %c0_i32_1 = arith.constant 0 : i32
    return %c0_i32, %c0_i32_0 : i32, i32
  }
  func.func @transform_10(%arg0: i32, %arg1: i32) -> (i32, i32, i32) {
    %c0_i32 = arith.constant 0 : i32
    %c0_i32_0 = arith.constant 0 : i32
    return %arg1, %arg0, %c0_i32 : i32, i32, i32
  }
}

</mosaic_0001>

<llo_original>
// kernel: _bottleneck_forward.1
$region0: #{_bottleneck_forward.1}
  #allocation0 [shape = 'u32[]', space=smem, size = 0x4, offset = 0x4, fixed_abs, tag = 'smem constant byte address 0x4 - core index']
  #allocation1 [shape = 'u32[144,128]{1,0:T(1,128)}', space=vmem, size = 0x12000, scoped, tag = 'internal scratch']
  #allocation2 [shape = 'f32[24,128]{1,0:T(8,128)}', space=vmem, size = 0x3000, scoped, tag = 'scratch operand']
  %s0 = inlined_call_operand.vmem [shape: f32[2,32,128], index: 0, kind: input, shape index: {}, may-alias: {0,1,2}]
  %s1 = inlined_call_operand.vmem [shape: f32[2,32,128], index: 1, kind: input, shape index: {}, may-alias: {0,1,2}]
  %s2 = inlined_call_operand.vmem [shape: f32[2,32,128], index: 2, kind: input, shape index: {}, may-alias: {0,1,2}]
  %s3 = inlined_call_operand.vmem [shape: f32[128,256], index: 3, kind: input, shape index: {}]
  %s4 = inlined_call_operand.vmem [shape: f32[3,128,128], index: 4, kind: input, shape index: {}]
  %s5 = inlined_call_operand.vmem [shape: f32[128,128], index: 5, kind: input, shape index: {}]
  %s6 = inlined_call_operand.vmem [shape: f32[1,128], index: 6, kind: input, shape index: {}]
  %s7 = inlined_call_operand.vmem [shape: f32[1,128], index: 7, kind: input, shape index: {}]
  %s8 = inlined_call_operand.vmem [shape: f32[1,128], index: 8, kind: input, shape index: {}]
  %s9 = inlined_call_operand.vmem [shape: f32[1,128], index: 9, kind: input, shape index: {}]
  %s10 = inlined_call_operand.vmem [shape: f32[2,24,128], index: 10, kind: output, shape index: {}]
  %s11 = sld [smem:[#allocation0]]
  $region73: #{_bottleneck_forward.1} parent=0
    _
  %s13 = ssub.s32 1, %s11
  %s14 = scalar_select 0, %s13, %s11
  loop: start=0, step=1, limit=8
  $region2: #{_bottleneck_forward.1} parent=0 // loop_pre_header
    _
  $region3: #{_bottleneck_forward.1} parent=0 // loop_header
    %s16 = sphi 0, %s20
    %p17 = scmp.ge.s32.totalorder %s16, 8
    %s23 = sphi 0, %s35
    %s24 = sphi 0, %s31
    %s25 = sphi 0, %s23
    %s26 = sphi 0, %s24
    %s27 = sphi 0, %s25
    %s28 = sphi 0, %s26
    %s46 = sphi 0, %s48
    %s49 = sphi 0, %s46
    %s50 = sphi 0, %s49
    %s66 = sphi 0, %s50
    %s74 = sphi 0, %s76
    %s77 = sphi 0, %s74
    %s78 = sphi 0, %s77
    %s94 = sphi 0, %s78
    %s104 = sphi 0, %s106
    %s107 = sphi 0, %s104
    %s108 = sphi 0, %s107
    %s124 = sphi 0, %s108
    %s128 = sphi 0, %s128
    %s130 = sphi 0, %s128
    %s131 = sphi 0, %s130
    %s145 = sphi 0, %s131
    %s149 = sphi 0, %s149
    %s151 = sphi 0, %s149
    %s152 = sphi 0, %s151
    %s166 = sphi 0, %s152
    %s170 = sphi 0, %s170
    %s172 = sphi 0, %s170
    %s173 = sphi 0, %s172
    %s187 = sphi 0, %s173
    %s191 = sphi 0, %s191
    %s193 = sphi 0, %s191
    %s194 = sphi 0, %s193
    %s208 = sphi 0, %s194
    %s212 = sphi 0, %s212
    %s214 = sphi 0, %s212
    %s215 = sphi 0, %s214
    %s229 = sphi 0, %s215
    %s233 = sphi 0, %s233
    %s235 = sphi 0, %s233
    %s236 = sphi 0, %s235
    %s250 = sphi 0, %s236
    %s254 = sphi 0, %s254
    %s256 = sphi 0, %s254
    %s257 = sphi 0, %s256
    %s271 = sphi 0, %s257
    %s279 = sphi 0, %s281
    %s282 = sphi 0, %s279
    %s283 = sphi 0, %s282
    %s299 = sphi 0, %s283
  $region4: #{_bottleneck_forward.1} parent=0 // loop_header_branch
    %19 = sbr.rel (%p17) target = $region8
  $region5: #{_bottleneck_forward.1} parent=0 // loop_body
    %s21 = ssub.s32 %s16, 1
    %s22 = ssub.s32 %s16, 2
    %s29 = sadd.s32 1, %s24
    %p30 = scmp.ge.s32.totalorder %s29, 2
    %s31 = scalar_select %p30, 0, %s29
    %s32 = sadd.s32 1, %s23
    %s33 = scalar_select %p30, %s32, %s23
    %p34 = scmp.ge.s32.totalorder %s33, 3
    %s35 = scalar_select %p34, 0, %s33
    %s36 = ssub.s32 %s23, 1
    %p37 = scmp.gt.s32.totalorder %s36, 0
    %s38 = scalar_select %p37, %s36, 0
    %s39 = ssub.s32 %s35, 1
    %p40 = scmp.gt.s32.totalorder %s39, 0
    %s41 = scalar_select %p40, %s39, 0
    %s42 = ssub.s32 %s24, %s31
    %s43 = ssub.s32 %s38, %s41
    %s44 = sor.u32 %s42, %s43
    %p45 = scmp.eq.s32.totalorder %s44, 0
    %s47 = sadd.s32 %s46, 1
    %s48 = scalar_select %p45, %s46, %s47
    %p51 = pneg %p45
    %p52 = scmp.eq.s32.totalorder %s16, 5
    %p53 = por %p51, %p52
    %p54 = scmp.ne.s32.totalorder %s46, %s49
    %p55 = scmp.eq.s32.totalorder %s16, 0
    %p56 = por %p54, %p55
    %p57 = scmp.ne.s32.totalorder %s46, %s49
    %p58 = scmp.eq.s32.totalorder %s21, 5
    %p59 = por %p57, %p58
    %p60 = scmp.ne.s32.totalorder %s49, %s50
    %p61 = scmp.eq.s32.totalorder %s21, 0
    %p62 = por %p60, %p61
    %p63 = scmp.ne.s32.totalorder %s49, %s50
    %p64 = scmp.eq.s32.totalorder %s22, 5
    %p65 = por %p63, %p64
    %p67 = scmp.ne.s32.totalorder %s50, %s66
    %p68 = scmp.eq.s32.totalorder %s22, 0
    %p69 = por %p67, %p68
    %s70 = ssub.s32 %s24, %s31
    %s71 = ssub.s32 %s23, %s35
    %s72 = sor.u32 %s70, %s71
    %p73 = scmp.eq.s32.totalorder %s72, 0
    %s75 = sadd.s32 %s74, 1
    %s76 = scalar_select %p73, %s74, %s75
    %p79 = pneg %p73
    %p80 = scmp.eq.s32.totalorder %s16, 5
    %p81 = por %p79, %p80
    %p82 = scmp.ne.s32.totalorder %s74, %s77
    %p83 = scmp.eq.s32.totalorder %s16, 0
    %p84 = por %p82, %p83
    %p85 = scmp.ne.s32.totalorder %s74, %s77
    %p86 = scmp.eq.s32.totalorder %s21, 5
    %p87 = por %p85, %p86
    %p88 = scmp.ne.s32.totalorder %s77, %s78
    %p89 = scmp.eq.s32.totalorder %s21, 0
    %p90 = por %p88, %p89
    %p91 = scmp.ne.s32.totalorder %s77, %s78
    %p92 = scmp.eq.s32.totalorder %s22, 5
    %p93 = por %p91, %p92
    %p95 = scmp.ne.s32.totalorder %s78, %s94
    %p96 = scmp.eq.s32.totalorder %s22, 0
    %p97 = por %p95, %p96
    %s98 = sadd.s32 %s23, 1
    %s99 = sadd.s32 %s35, 1
    %s100 = ssub.s32 %s24, %s31
    %s101 = ssub.s32 %s98, %s99
    %s102 = sor.u32 %s100, %s101
    %p103 = scmp.eq.s32.totalorder %s102, 0
    %s105 = sadd.s32 %s104, 1
    %s106 = scalar_select %p103, %s104, %s105
    %p109 = pneg %p103
    %p110 = scmp.eq.s32.totalorder %s16, 5
    %p111 = por %p109, %p110
    %p112 = scmp.ne.s32.totalorder %s104, %s107
    %p113 = scmp.eq.s32.totalorder %s16, 0
    %p114 = por %p112, %p113
    %p115 = scmp.ne.s32.totalorder %s104, %s107
    %p116 = scmp.eq.s32.totalorder %s21, 5
    %p117 = por %p115, %p116
    %p118 = scmp.ne.s32.totalorder %s107, %s108
    %p119 = scmp.eq.s32.totalorder %s21, 0
    %p120 = por %p118, %p119
    %p121 = scmp.ne.s32.totalorder %s107, %s108
    %p122 = scmp.eq.s32.totalorder %s22, 5
    %p123 = por %p121, %p122
    %p125 = scmp.ne.s32.totalorder %s108, %s124
    %p126 = scmp.eq.s32.totalorder %s22, 0
    %p127 = por %p125, %p126
    %s129 = sadd.s32 %s128, 1
    %p132 = scmp.eq.s32.totalorder %s16, 5
    %p133 = scmp.ne.s32.totalorder %s128, %s130
    %p134 = scmp.eq.s32.totalorder %s16, 0
    %p135 = por %p133, %p134
    %p136 = scmp.ne.s32.totalorder %s128, %s130
    %p137 = scmp.eq.s32.totalorder %s21, 5
    %p138 = por %p136, %p137
    %p139 = scmp.ne.s32.totalorder %s130, %s131
    %p140 = scmp.eq.s32.totalorder %s21, 0
    %p141 = por %p139, %p140
    %p142 = scmp.ne.s32.totalorder %s130, %s131
    %p143 = scmp.eq.s32.totalorder %s22, 5
    %p144 = por %p142, %p143
    %p146 = scmp.ne.s32.totalorder %s131, %s145
    %p147 = scmp.eq.s32.totalorder %s22, 0
    %p148 = por %p146, %p147
    %s150 = sadd.s32 %s149, 1
    %p153 = scmp.eq.s32.totalorder %s16, 5
    %p154 = scmp.ne.s32.totalorder %s149, %s151
    %p155 = scmp.eq.s32.totalorder %s16, 0
    %p156 = por %p154, %p155
    %p157 = scmp.ne.s32.totalorder %s149, %s151
    %p158 = scmp.eq.s32.totalorder %s21, 5
    %p159 = por %p157, %p158
    %p160 = scmp.ne.s32.totalorder %s151, %s152
    %p161 = scmp.eq.s32.totalorder %s21, 0
    %p162 = por %p160, %p161
    %p163 = scmp.ne.s32.totalorder %s151, %s152
    %p164 = scmp.eq.s32.totalorder %s22, 5
    %p165 = por %p163, %p164
    %p167 = scmp.ne.s32.totalorder %s152, %s166
    %p168 = scmp.eq.s32.totalorder %s22, 0
    %p169 = por %p167, %p168
    %s171 = sadd.s32 %s170, 1
    %p174 = scmp.eq.s32.totalorder %s16, 5
    %p175 = scmp.ne.s32.totalorder %s170, %s172
    %p176 = scmp.eq.s32.totalorder %s16, 0
    %p177 = por %p175, %p176
    %p178 = scmp.ne.s32.totalorder %s170, %s172
    %p179 = scmp.eq.s32.totalorder %s21, 5
    %p180 = por %p178, %p179
    %p181 = scmp.ne.s32.totalorder %s172, %s173
    %p182 = scmp.eq.s32.totalorder %s21, 0
    %p183 = por %p181, %p182
    %p184 = scmp.ne.s32.totalorder %s172, %s173
    %p185 = scmp.eq.s32.totalorder %s22, 5
    %p186 = por %p184, %p185
    %p188 = scmp.ne.s32.totalorder %s173, %s187
    %p189 = scmp.eq.s32.totalorder %s22, 0
    %p190 = por %p188, %p189
    %s192 = sadd.s32 %s191, 1
    %p195 = scmp.eq.s32.totalorder %s16, 5
    %p196 = scmp.ne.s32.totalorder %s191, %s193
    %p197 = scmp.eq.s32.totalorder %s16, 0
    %p198 = por %p196, %p197
    %p199 = scmp.ne.s32.totalorder %s191, %s193
    %p200 = scmp.eq.s32.totalorder %s21, 5
    %p201 = por %p199, %p200
    %p202 = scmp.ne.s32.totalorder %s193, %s194
    %p203 = scmp.eq.s32.totalorder %s21, 0
    %p204 = por %p202, %p203
    %p205 = scmp.ne.s32.totalorder %s193, %s194
    %p206 = scmp.eq.s32.totalorder %s22, 5
    %p207 = por %p205, %p206
    %p209 = scmp.ne.s32.totalorder %s194, %s208
    %p210 = scmp.eq.s32.totalorder %s22, 0
    %p211 = por %p209, %p210
    %s213 = sadd.s32 %s212, 1
    %p216 = scmp.eq.s32.totalorder %s16, 5
    %p217 = scmp.ne.s32.totalorder %s212, %s214
    %p218 = scmp.eq.s32.totalorder %s16, 0
    %p219 = por %p217, %p218
    %p220 = scmp.ne.s32.totalorder %s212, %s214
    %p221 = scmp.eq.s32.totalorder %s21, 5
    %p222 = por %p220, %p221
    %p223 = scmp.ne.s32.totalorder %s214, %s215
    %p224 = scmp.eq.s32.totalorder %s21, 0
    %p225 = por %p223, %p224
    %p226 = scmp.ne.s32.totalorder %s214, %s215
    %p227 = scmp.eq.s32.totalorder %s22, 5
    %p228 = por %p226, %p227
    %p230 = scmp.ne.s32.totalorder %s215, %s229
    %p231 = scmp.eq.s32.totalorder %s22, 0
    %p232 = por %p230, %p231
    %s234 = sadd.s32 %s233, 1
    %p237 = scmp.eq.s32.totalorder %s16, 5
    %p238 = scmp.ne.s32.totalorder %s233, %s235
    %p239 = scmp.eq.s32.totalorder %s16, 0
    %p240 = por %p238, %p239
    %p241 = scmp.ne.s32.totalorder %s233, %s235
    %p242 = scmp.eq.s32.totalorder %s21, 5
    %p243 = por %p241, %p242
    %p244 = scmp.ne.s32.totalorder %s235, %s236
    %p245 = scmp.eq.s32.totalorder %s21, 0
    %p246 = por %p244, %p245
    %p247 = scmp.ne.s32.totalorder %s235, %s236
    %p248 = scmp.eq.s32.totalorder %s22, 5
    %p249 = por %p247, %p248
    %p251 = scmp.ne.s32.totalorder %s236, %s250
    %p252 = scmp.eq.s32.totalorder %s22, 0
    %p253 = por %p251, %p252
    %s255 = sadd.s32 %s254, 1
    %p258 = scmp.eq.s32.totalorder %s16, 5
    %p259 = scmp.ne.s32.totalorder %s254, %s256
    %p260 = scmp.eq.s32.totalorder %s16, 0
    %p261 = por %p259, %p260
    %p262 = scmp.ne.s32.totalorder %s254, %s256
    %p263 = scmp.eq.s32.totalorder %s21, 5
    %p264 = por %p262, %p263
    %p265 = scmp.ne.s32.totalorder %s256, %s257
    %p266 = scmp.eq.s32.totalorder %s21, 0
    %p267 = por %p265, %p266
    %p268 = scmp.ne.s32.totalorder %s256, %s257
    %p269 = scmp.eq.s32.totalorder %s22, 5
    %p270 = por %p268, %p269
    %p272 = scmp.ne.s32.totalorder %s257, %s271
    %p273 = scmp.eq.s32.totalorder %s22, 0
    %p274 = por %p272, %p273
    %s275 = ssub.s32 %s24, %s31
    %s276 = ssub.s32 %s23, %s35
    %s277 = sor.u32 %s275, %s276
    %p278 = scmp.eq.s32.totalorder %s277, 0
    %s280 = sadd.s32 %s279, 1
    %s281 = scalar_select %p278, %s279, %s280
    %p284 = pneg %p278
    %p285 = scmp.eq.s32.totalorder %s16, 5
    %p286 = por %p284, %p285
    %p287 = scmp.ne.s32.totalorder %s279, %s282
    %p288 = scmp.eq.s32.totalorder %s16, 0
    %p289 = por %p287, %p288
    %p290 = scmp.ne.s32.totalorder %s279, %s282
    %p291 = scmp.eq.s32.totalorder %s21, 5
    %p292 = por %p290, %p291
    %p293 = scmp.ne.s32.totalorder %s282, %s283
    %p294 = scmp.eq.s32.totalorder %s21, 0
    %p295 = por %p293, %p294
    %p296 = scmp.ne.s32.totalorder %s282, %s283
    %p297 = scmp.eq.s32.totalorder %s22, 5
    %p298 = por %p296, %p297
    %p300 = scmp.ne.s32.totalorder %s283, %s299
    %p301 = scmp.eq.s32.totalorder %s22, 0
    %p302 = por %p300, %p301
    %p303 = scmp.le.s32.totalorder 1, %s16
    %p304 = scmp.lt.s32.totalorder %s16, 7
    %p305 = pnand %p303, %p304
    %p306 = pneg %p305
    // Predicated region
    $region9: #{_bottleneck_forward.1} parent=5 // pred_check
      _
    $region10: #{_bottleneck_forward.1} parent=5 // pred_check_branch
      %308 = sbr.rel (%p305) target = $region12
    $region11: #{_bottleneck_forward.1} parent=5 // pred_region
      %s309 = ssub.s32 %s16, 1
      // Predicated region
      $region13: #{_bottleneck_forward.1} parent=11 // pred_check
        %p310 = pneg %p141
      $region14: #{_bottleneck_forward.1} parent=11 // pred_check_branch
        %312 = sbr.rel (%p310) target = $region16
      $region15: #{_bottleneck_forward.1} parent=11 // pred_region
        _
      $region16: #{_bottleneck_forward.1} parent=11 // pred_fallthru
        _
      // Predicated region
      $region17: #{_bottleneck_forward.1} parent=11 // pred_check
        %p313 = pneg %p162
      $region18: #{_bottleneck_forward.1} parent=11 // pred_check_branch
        %315 = sbr.rel (%p313) target = $region20
      $region19: #{_bottleneck_forward.1} parent=11 // pred_region
        _
      $region20: #{_bottleneck_forward.1} parent=11 // pred_fallthru
        _
      // Predicated region
      $region21: #{_bottleneck_forward.1} parent=11 // pred_check
        %p316 = pneg %p183
      $region22: #{_bottleneck_forward.1} parent=11 // pred_check_branch
        %318 = sbr.rel (%p316) target = $region24
      $region23: #{_bottleneck_forward.1} parent=11 // pred_region
        _
      $region24: #{_bottleneck_forward.1} parent=11 // pred_fallthru
        _
      // Predicated region
      $region25: #{_bottleneck_forward.1} parent=11 // pred_check
        %p319 = pneg %p204
      $region26: #{_bottleneck_forward.1} parent=11 // pred_check_branch
        %321 = sbr.rel (%p319) target = $region28
      $region27: #{_bottleneck_forward.1} parent=11 // pred_region
        _
      $region28: #{_bottleneck_forward.1} parent=11 // pred_fallthru
        _
      // Predicated region
      $region29: #{_bottleneck_forward.1} parent=11 // pred_check
        %p322 = pneg %p225
      $region30: #{_bottleneck_forward.1} parent=11 // pred_check_branch
        %324 = sbr.rel (%p322) target = $region32
      $region31: #{_bottleneck_forward.1} parent=11 // pred_region
        _
      $region32: #{_bottleneck_forward.1} parent=11 // pred_fallthru
        _
      // Predicated region
      $region33: #{_bottleneck_forward.1} parent=11 // pred_check
        %p325 = pneg %p246
      $region34: #{_bottleneck_forward.1} parent=11 // pred_check_branch
        %327 = sbr.rel (%p325) target = $region36
      $region35: #{_bottleneck_forward.1} parent=11 // pred_region
        _
      $region36: #{_bottleneck_forward.1} parent=11 // pred_fallthru
        _
      // Predicated region
      $region37: #{_bottleneck_forward.1} parent=11 // pred_check
        %p328 = pneg %p267
      $region38: #{_bottleneck_forward.1} parent=11 // pred_check_branch
        %330 = sbr.rel (%p328) target = $region40
      $region39: #{_bottleneck_forward.1} parent=11 // pred_region
        _
      $region40: #{_bottleneck_forward.1} parent=11 // pred_fallthru
        _
    $region12: #{_bottleneck_forward.1} parent=5 // pred_fallthru
      _
    %p331 = scmp.lt.s32.totalorder %s16, 6
    // Predicated region
    $region41: #{_bottleneck_forward.1} parent=5 // pred_check
      %p332 = pneg %p331
    $region42: #{_bottleneck_forward.1} parent=5 // pred_check_branch
      %334 = sbr.rel (%p332) target = $region44
    $region43: #{_bottleneck_forward.1} parent=5 // pred_region
      // Predicated region
      $region45: #{_bottleneck_forward.1} parent=43 // pred_check
        %p335 = pneg %p56
      $region46: #{_bottleneck_forward.1} parent=43 // pred_check_branch
        %337 = sbr.rel (%p335) target = $region48
      $region47: #{_bottleneck_forward.1} parent=43 // pred_region
        %s338 = ssub.s32 %s23, 1
        %p339 = scmp.gt.s32.totalorder %s338, 0
        %s340 = scalar_select %p339, %s338, 0
        %p341 = scmp.lt.s32.totalorder %s24, 1
        %s342 = scalar_select %p341, %s24, 1
        %p343 = scmp.lt.s32.totalorder %s340, 3
        %s344 = scalar_select %p343, %s340, 3
        %s345 = smul.addr %s342, 4
        %s346 = sadd.s32 %s344, %s345
        %s347 = smul.addr %s346, 8
        %s348 = scalar_lea.vmem %s0, %s347
        %s349 = ssub.s32 %s23, 1
        %p350 = scmp.gt.s32.totalorder %s349, 0
        %s351 = scalar_select %p350, %s349, 0
      $region48: #{_bottleneck_forward.1} parent=43 // pred_fallthru
        _
      // Predicated region
      $region49: #{_bottleneck_forward.1} parent=43 // pred_check
        %p352 = pneg %p84
      $region50: #{_bottleneck_forward.1} parent=43 // pred_check_branch
        %354 = sbr.rel (%p352) target = $region52
      $region51: #{_bottleneck_forward.1} parent=43 // pred_region
        %p355 = scmp.lt.s32.totalorder %s24, 1
        %s356 = scalar_select %p355, %s24, 1
        %p357 = scmp.lt.s32.totalorder %s23, 3
        %s358 = scalar_select %p357, %s23, 3
        %s359 = smul.addr %s356, 4
        %s360 = sadd.s32 %s358, %s359
        %s361 = smul.addr %s360, 8
        %s362 = scalar_lea.vmem %s1, %s361
      $region52: #{_bottleneck_forward.1} parent=43 // pred_fallthru
        _
      // Predicated region
      $region53: #{_bottleneck_forward.1} parent=43 // pred_check
        %p363 = pneg %p114
      $region54: #{_bottleneck_forward.1} parent=43 // pred_check_branch
        %365 = sbr.rel (%p363) target = $region56
      $region55: #{_bottleneck_forward.1} parent=43 // pred_region
        %s366 = sadd.s32 %s23, 1
        %p367 = scmp.lt.s32.totalorder %s24, 1
        %s368 = scalar_select %p367, %s24, 1
        %p369 = scmp.lt.s32.totalorder %s366, 3
        %s370 = scalar_select %p369, %s366, 3
        %s371 = smul.addr %s368, 4
        %s372 = sadd.s32 %s370, %s371
        %s373 = smul.addr %s372, 8
        %s374 = scalar_lea.vmem %s2, %s373
        %s375 = sadd.s32 %s23, 1
      $region56: #{_bottleneck_forward.1} parent=43 // pred_fallthru
        _
    $region44: #{_bottleneck_forward.1} parent=5 // pred_fallthru
      _
    %p376 = scmp.le.s32.totalorder 1, %s16
    %p377 = scmp.lt.s32.totalorder %s16, 7
    %p378 = pnand %p376, %p377
    %p379 = pneg %p378
    // Predicated region
    $region57: #{_bottleneck_forward.1} parent=5 // pred_check
      _
    $region58: #{_bottleneck_forward.1} parent=5 // pred_check_branch
      %381 = sbr.rel (%p378) target = $region60
    $region59: #{_bottleneck_forward.1} parent=5 // pred_region
      %s382 = ssub.s32 %s16, 1
      %s383 = ssub.s32 %s25, 1
      %p384 = scmp.gt.s32.totalorder %s383, 0
      %s385 = scalar_select %p384, %s383, 0
      %p386 = scmp.lt.s32.totalorder %s26, 1
      %s387 = scalar_select %p386, %s26, 1
      %p388 = scmp.lt.s32.totalorder %s385, 3
      %s389 = scalar_select %p388, %s385, 3
      %s390 = smul.addr %s387, 4
      %s391 = sadd.s32 %s389, %s390
      %s392 = smul.addr %s391, 8
      %s393 = scalar_lea.vmem %s0, %s392
      %p394 = pneg %p62
      %p395 = pneg %p59
      %p396 = scmp.lt.s32.totalorder %s26, 1
      %s397 = scalar_select %p396, %s26, 1
      %p398 = scmp.lt.s32.totalorder %s25, 3
      %s399 = scalar_select %p398, %s25, 3
      %s400 = smul.addr %s397, 4
      %s401 = sadd.s32 %s399, %s400
      %s402 = smul.addr %s401, 8
      %s403 = scalar_lea.vmem %s1, %s402
      %p404 = pneg %p90
      %p405 = pneg %p87
      %s406 = sadd.s32 %s25, 1
      %p407 = scmp.lt.s32.totalorder %s26, 1
      %s408 = scalar_select %p407, %s26, 1
      %p409 = scmp.lt.s32.totalorder %s406, 3
      %s410 = scalar_select %p409, %s406, 3
      %s411 = smul.addr %s408, 4
      %s412 = sadd.s32 %s410, %s411
      %s413 = smul.addr %s412, 8
      %s414 = scalar_lea.vmem %s2, %s413
      %p415 = pneg %p120
      %p416 = pneg %p117
      %p417 = pneg %p141
      %p418 = pneg %p138
      %p419 = pneg %p162
      %p420 = pneg %p159
      %p421 = pneg %p183
      %p422 = pneg %p180
      %p423 = pneg %p204
      %p424 = pneg %p201
      %p425 = pneg %p225
      %p426 = pneg %p222
      %p427 = pneg %p246
      %p428 = pneg %p243
      %p429 = pneg %p267
      %p430 = pneg %p264
      %p431 = pneg %p295
      %p432 = pneg %p292
      %p433 = scmp.lt.s32.totalorder %s26, 1
      %s434 = scalar_select %p433, %s26, 1
      %p435 = scmp.lt.s32.totalorder %s25, 2
      %s436 = scalar_select %p435, %s25, 2
      %s437 = smul.addr %s434, 3
      %s438 = sadd.s32 %s436, %s437
      %s439 = smul.addr %s438, 8
      %s440 = scalar_lea.vmem %s10, %s439
      %s441 = ssub.s32 %s25, 1
      %p442 = scmp.gt.s32.totalorder %s441, 0
      %s443 = scalar_select %p442, %s441, 0
      %p444 = scmp.lt.s32.totalorder %s26, 1
      %s445 = scalar_select %p444, %s26, 1
      %p446 = scmp.lt.s32.totalorder %s443, 3
      %s447 = scalar_select %p446, %s443, 3
      %s448 = smul.addr %s445, 4
      %s449 = sadd.s32 %s447, %s448
      %s450 = smul.addr %s449, 8
      %s451 = scalar_lea.vmem %s0, %s450
      %s452 = ssub.s32 %s25, 1
      %p453 = scmp.gt.s32.totalorder %s452, 0
      %s454 = scalar_select %p453, %s452, 0
      %p455 = scmp.lt.s32.totalorder %s26, 1
      %s456 = scalar_select %p455, %s26, 1
      %p457 = scmp.lt.s32.totalorder %s25, 3
      %s458 = scalar_select %p457, %s25, 3
      %s459 = smul.addr %s456, 4
      %s460 = sadd.s32 %s458, %s459
      %s461 = smul.addr %s460, 8
      %s462 = scalar_lea.vmem %s1, %s461
      %s463 = sadd.s32 %s25, 1
      %p464 = scmp.lt.s32.totalorder %s26, 1
      %s465 = scalar_select %p464, %s26, 1
      %p466 = scmp.lt.s32.totalorder %s463, 3
      %s467 = scalar_select %p466, %s463, 3
      %s468 = smul.addr %s465, 4
      %s469 = sadd.s32 %s467, %s468
      %s470 = smul.addr %s469, 8
      %s471 = scalar_lea.vmem %s2, %s470
      %s472 = sadd.s32 %s25, 1
      %p473 = scmp.lt.s32.totalorder %s26, 1
      %s474 = scalar_select %p473, %s26, 1
      %p475 = scmp.lt.s32.totalorder %s25, 2
      %s476 = scalar_select %p475, %s25, 2
      %s477 = smul.addr %s474, 3
      %s478 = sadd.s32 %s476, %s477
      %s479 = smul.addr %s478, 8
      %s480 = scalar_lea.vmem %s10, %s479
      %v481 = vld [vmem:[%s3] sm:$0xff]
      %v482 = vld [vmem:[%s3 + $0x8] sm:$0xff]
      %v483 = vld [vmem:[%s3 + $0x10] sm:$0xff]
      %v484 = vld [vmem:[%s3 + $0x18] sm:$0xff]
      %v485 = vld [vmem:[%s3 + $0x20] sm:$0xff]
      %v486 = vld [vmem:[%s3 + $0x28] sm:$0xff]
      %v487 = vld [vmem:[%s3 + $0x30] sm:$0xff]
      %v488 = vld [vmem:[%s3 + $0x38] sm:$0xff]
      %v489 = vld [vmem:[%s3 + $0x40] sm:$0xff]
      %v490 = vld [vmem:[%s3 + $0x48] sm:$0xff]
      %v491 = vld [vmem:[%s3 + $0x50] sm:$0xff]
      %v492 = vld [vmem:[%s3 + $0x58] sm:$0xff]
      %v493 = vld [vmem:[%s3 + $0x60] sm:$0xff]
      %v494 = vld [vmem:[%s3 + $0x68] sm:$0xff]
      %v495 = vld [vmem:[%s3 + $0x70] sm:$0xff]
      %v496 = vld [vmem:[%s3 + $0x78] sm:$0xff]
      %v497 = vld [vmem:[%s3 + $0x80] sm:$0xff]
      %v498 = vld [vmem:[%s3 + $0x88] sm:$0xff]
      %v499 = vld [vmem:[%s3 + $0x90] sm:$0xff]
      %v500 = vld [vmem:[%s3 + $0x98] sm:$0xff]
      %v501 = vld [vmem:[%s3 + $0xa0] sm:$0xff]
      %v502 = vld [vmem:[%s3 + $0xa8] sm:$0xff]
      %v503 = vld [vmem:[%s3 + $0xb0] sm:$0xff]
      %v504 = vld [vmem:[%s3 + $0xb8] sm:$0xff]
      %v505 = vld [vmem:[%s3 + $0xc0] sm:$0xff]
      %v506 = vld [vmem:[%s3 + $0xc8] sm:$0xff]
      %v507 = vld [vmem:[%s3 + $0xd0] sm:$0xff]
      %v508 = vld [vmem:[%s3 + $0xd8] sm:$0xff]
      %v509 = vld [vmem:[%s3 + $0xe0] sm:$0xff]
      %v510 = vld [vmem:[%s3 + $0xe8] sm:$0xff]
      %v511 = vld [vmem:[%s3 + $0xf0] sm:$0xff]
      %v512 = vld [vmem:[%s3 + $0xf8] sm:$0xff]
      %v513 = vld [vmem:[%s6] sm:$0x1]
      %v514 = vld [vmem:[%s462] sm:$0xff]
      %515 = vmatprep.subr.mxu0 %v512
      %516 = vmatpush1.msra.mxu0 %v511
      %517 = vmatprep.subr.mxu0 %v510
      %518 = vmatpush1.msra.mxu0 %v509
      %519 = vmatprep.subr.mxu0 %v508
      %520 = vmatpush1.msra.mxu0 %v507
      %521 = vmatprep.subr.mxu0 %v506
      %522 = vmatpush1.msra.mxu0 %v505
      %523 = vmatprep.subr.mxu0 %v504
      %524 = vmatpush1.msra.mxu0 %v503
      %525 = vmatprep.subr.mxu0 %v502
      %526 = vmatpush1.msra.mxu0 %v501
      %527 = vmatprep.subr.mxu0 %v500
      %528 = vmatpush1.msra.mxu0 %v499
      %529 = vmatprep.subr.mxu0 %v498
      %530 = vmatpush1.msra.mxu0 %v497
      %531 = vmatprep.subr.mxu0 %v496
      %532 = vmatpush1.msra.mxu0 %v495
      %533 = vmatprep.subr.mxu0 %v494
      %534 = vmatpush1.msra.mxu0 %v493
      %535 = vmatprep.subr.mxu0 %v492
      %536 = vmatpush1.msra.mxu0 %v491
      %537 = vmatprep.subr.mxu0 %v490
      %538 = vmatpush1.msra.mxu0 %v489
      %539 = vmatprep.subr.mxu0 %v488
      %540 = vmatpush1.msra.mxu0 %v487
      %541 = vmatprep.subr.mxu0 %v486
      %542 = vmatpush1.msra.mxu0 %v485
      %543 = vmatprep.subr.mxu0 %v484
      %544 = vmatpush1.msra.mxu0 %v483
      %545 = vmatprep.subr.mxu0 %v482
      %546 = vmatpush1.msra.mxu0 %v481
      %547 = vmatprep.subr.mxu0 0.0
      %548 = vmatpush2.msra.mxu0 0.0
      %549 = vmatprep.subr.mxu0 0.0
      %550 = vmatpush2.msra.mxu0 0.0
      %551 = vmatprep.subr.mxu0 0.0
      %552 = vmatpush2.msra.mxu0 0.0
      %553 = vmatprep.subr.mxu0 0.0
      %554 = vmatpush2.msra.mxu0 0.0
      %555 = vmatprep.subr.mxu0 0.0
      %556 = vmatpush2.msra.mxu0 0.0
      %557 = vmatprep.subr.mxu0 0.0
      %558 = vmatpush2.msra.mxu0 0.0
      %559 = vmatprep.subr.mxu0 0.0
      %560 = vmatpush2.msra.mxu0 0.0
      %561 = vmatprep.subr.mxu0 0.0
      %562 = vmatpush2.msra.mxu0 0.0
      %563 = vmatprep.subr.mxu0 0.0
      %564 = vmatpush2.msra.mxu0 0.0
      %565 = vmatprep.subr.mxu0 0.0
      %566 = vmatpush2.msra.mxu0 0.0
      %567 = vmatprep.subr.mxu0 0.0
      %568 = vmatpush2.msra.mxu0 0.0
      %569 = vmatprep.subr.mxu0 0.0
      %570 = vmatpush2.msra.mxu0 0.0
      %571 = vmatprep.subr.mxu0 0.0
      %572 = vmatpush2.msra.mxu0 0.0
      %573 = vmatprep.subr.mxu0 0.0
      %574 = vmatpush2.msra.mxu0 0.0
      %575 = vmatprep.subr.mxu0 0.0
      %576 = vmatpush2.msra.mxu0 0.0
      %577 = vmatprep.subr.mxu0 0.0
      %578 = vmatpush2.msra.mxu0 0.0
      %579 = vmatprep.mubr.f32.mxu0 0.0
      %580 = vmatmul.mubr.f32.gmra.mxu0 %v514
      %v581 = vpop.f32.mrf.mxu0
      %v582 = vadd.f32 0.0, %v581
      %v583 = vpop.f32.mrf.mxu0
      %v584 = vadd.f32 0.0, %v583
      %585 = vdwg.mxu0
      %v587 = vlaneseq
      %v588 = vshrl.u32 %v587, 7
      %v589 = vsub.s32 0, %v588
      %v590 = vrot.slane %v513, %v589
      %v592 = vadd.f32 %v582, %v590
      %v593 = vmax.f32 %v592, 0.0
      %v594 = vld [vmem:[%s9] sm:$0x1]
      %v596 = vlaneseq
      %v597 = vshrl.u32 %v596, 7
      %v598 = vsub.s32 0, %v597
      %v599 = vrot.slane %v594, %v598
      %v601 = vadd.f32 %v584, %v599
      %v602 = vlaneseq
      %v603 = vshrl.u32 %v602, 7
      %s604 = smul.u32 %s25, 8
      %v605 = vstv %s604
      %v606 = vadd.s32 %v603, %v605
      %vm607 = vcmp.lt.s32.totalorder %v606, 20
      %v608 = vsel %vm607, 1, 0
      %vm609 = vcmp.eq.s32.totalorder %v608, 1
      %v610 = vsel %vm609, %v593, 0.0
      %v611 = vld [vmem:[%s451] sm:$0xff]
      %612 = vmatprep.subr.mxu0 0.0
      %613 = vmatpush1.msra.mxu0 %v511
      %614 = vmatprep.subr.mxu0 0.0
      %615 = vmatpush1.msra.mxu0 %v509
      %616 = vmatprep.subr.mxu0 0.0
      %617 = vmatpush1.msra.mxu0 %v507
      %618 = vmatprep.subr.mxu0 0.0
      %619 = vmatpush1.msra.mxu0 %v505
      %620 = vmatprep.subr.mxu0 0.0
      %621 = vmatpush1.msra.mxu0 %v503
      %622 = vmatprep.subr.mxu0 0.0
      %623 = vmatpush1.msra.mxu0 %v501
      %624 = vmatprep.subr.mxu0 0.0
      %625 = vmatpush1.msra.mxu0 %v499
      %626 = vmatprep.subr.mxu0 0.0
      %627 = vmatpush1.msra.mxu0 %v497
      %628 = vmatprep.subr.mxu0 0.0
      %629 = vmatpush1.msra.mxu0 %v495
      %630 = vmatprep.subr.mxu0 0.0
      %631 = vmatpush1.msra.mxu0 %v493
      %632 = vmatprep.subr.mxu0 0.0
      %633 = vmatpush1.msra.mxu0 %v491
      %634 = vmatprep.subr.mxu0 0.0
      %635 = vmatpush1.msra.mxu0 %v489
      %636 = vmatprep.subr.mxu0 0.0
      %637 = vmatpush1.msra.mxu0 %v487
      %638 = vmatprep.subr.mxu0 0.0
      %639 = vmatpush1.msra.mxu0 %v485
      %640 = vmatprep.subr.mxu0 0.0
      %641 = vmatpush1.msra.mxu0 %v483
      %642 = vmatprep.subr.mxu0 0.0
      %643 = vmatpush1.msra.mxu0 %v481
      %644 = vmatprep.subr.mxu0 0.0
      %645 = vmatpush2.msra.mxu0 0.0
      %646 = vmatprep.subr.mxu0 0.0
      %647 = vmatpush2.msra.mxu0 0.0
      %648 = vmatprep.subr.mxu0 0.0
      %649 = vmatpush2.msra.mxu0 0.0
      %650 = vmatprep.subr.mxu0 0.0
      %651 = vmatpush2.msra.mxu0 0.0
      %652 = vmatprep.subr.mxu0 0.0
      %653 = vmatpush2.msra.mxu0 0.0
      %654 = vmatprep.subr.mxu0 0.0
      %655 = vmatpush2.msra.mxu0 0.0
      %656 = vmatprep.subr.mxu0 0.0
      %657 = vmatpush2.msra.mxu0 0.0
      %658 = vmatprep.subr.mxu0 0.0
      %659 = vmatpush2.msra.mxu0 0.0
      %660 = vmatprep.subr.mxu0 0.0
      %661 = vmatpush2.msra.mxu0 0.0
      %662 = vmatprep.subr.mxu0 0.0
      %663 = vmatpush2.msra.mxu0 0.0
      %664 = vmatprep.subr.mxu0 0.0
      %665 = vmatpush2.msra.mxu0 0.0
      %666 = vmatprep.subr.mxu0 0.0
      %667 = vmatpush2.msra.mxu0 0.0
      %668 = vmatprep.subr.mxu0 0.0
      %669 = vmatpush2.msra.mxu0 0.0
      %670 = vmatprep.subr.mxu0 0.0
      %671 = vmatpush2.msra.mxu0 0.0
      %672 = vmatprep.subr.mxu0 0.0
      %673 = vmatpush2.msra.mxu0 0.0
      %674 = vmatprep.subr.mxu0 0.0
      %675 = vmatpush2.msra.mxu0 0.0
      %676 = vmatprep.mubr.f32.mxu0 0.0
      %677 = vmatmul.mubr.f32.gmra.mxu0 %v611
      %v678 = vpop.f32.mrf.mxu0
      %v679 = vadd.f32 0.0, %v678
      %v680 = vpop.f32.mrf.mxu0
      %681 = vdwg.mxu0
      %v682 = vld [vmem:[%s471] sm:$0xff]
      %683 = vmatprep.subr.mxu0 0.0
      %684 = vmatpush1.msra.mxu0 %v511
      %685 = vmatprep.subr.mxu0 0.0
      %686 = vmatpush1.msra.mxu0 %v509
      %687 = vmatprep.subr.mxu0 0.0
      %688 = vmatpush1.msra.mxu0 %v507
      %689 = vmatprep.subr.mxu0 0.0
      %690 = vmatpush1.msra.mxu0 %v505
      %691 = vmatprep.subr.mxu0 0.0
      %692 = vmatpush1.msra.mxu0 %v503
      %693 = vmatprep.subr.mxu0 0.0
      %694 = vmatpush1.msra.mxu0 %v501
      %695 = vmatprep.subr.mxu0 0.0
      %696 = vmatpush1.msra.mxu0 %v499
      %697 = vmatprep.subr.mxu0 0.0
      %698 = vmatpush1.msra.mxu0 %v497
      %699 = vmatprep.subr.mxu0 0.0
      %700 = vmatpush1.msra.mxu0 %v495
      %701 = vmatprep.subr.mxu0 0.0
      %702 = vmatpush1.msra.mxu0 %v493
      %703 = vmatprep.subr.mxu0 0.0
      %704 = vmatpush1.msra.mxu0 %v491
      %705 = vmatprep.subr.mxu0 0.0
      %706 = vmatpush1.msra.mxu0 %v489
      %707 = vmatprep.subr.mxu0 0.0
      %708 = vmatpush1.msra.mxu0 %v487
      %709 = vmatprep.subr.mxu0 0.0
      %710 = vmatpush1.msra.mxu0 %v485
      %711 = vmatprep.subr.mxu0 0.0
      %712 = vmatpush1.msra.mxu0 %v483
      %713 = vmatprep.subr.mxu0 0.0
      %714 = vmatpush1.msra.mxu0 %v481
      %715 = vmatprep.subr.mxu0 0.0
      %716 = vmatpush2.msra.mxu0 0.0
      %717 = vmatprep.subr.mxu0 0.0
      %718 = vmatpush2.msra.mxu0 0.0
      %719 = vmatprep.subr.mxu0 0.0
      %720 = vmatpush2.msra.mxu0 0.0
      %721 = vmatprep.subr.mxu0 0.0
      %722 = vmatpush2.msra.mxu0 0.0
      %723 = vmatprep.subr.mxu0 0.0
      %724 = vmatpush2.msra.mxu0 0.0
      %725 = vmatprep.subr.mxu0 0.0
      %726 = vmatpush2.msra.mxu0 0.0
      %727 = vmatprep.subr.mxu0 0.0
      %728 = vmatpush2.msra.mxu0 0.0
      %729 = vmatprep.subr.mxu0 0.0
      %730 = vmatpush2.msra.mxu0 0.0
      %731 = vmatprep.subr.mxu0 0.0
      %732 = vmatpush2.msra.mxu0 0.0
      %733 = vmatprep.subr.mxu0 0.0
      %734 = vmatpush2.msra.mxu0 0.0
      %735 = vmatprep.subr.mxu0 0.0
      %736 = vmatpush2.msra.mxu0 0.0
      %737 = vmatprep.subr.mxu0 0.0
      %738 = vmatpush2.msra.mxu0 0.0
      %739 = vmatprep.subr.mxu0 0.0
      %740 = vmatpush2.msra.mxu0 0.0
      %741 = vmatprep.subr.mxu0 0.0
      %742 = vmatpush2.msra.mxu0 0.0
      %743 = vmatprep.subr.mxu0 0.0
      %744 = vmatpush2.msra.mxu0 0.0
      %745 = vmatprep.subr.mxu0 0.0
      %746 = vmatpush2.msra.mxu0 0.0
      %747 = vmatprep.mubr.f32.mxu0 0.0
      %748 = vmatmul.mubr.f32.gmra.mxu0 %v682
      %v749 = vpop.f32.mrf.mxu0
      %v750 = vadd.f32 0.0, %v749
      %v751 = vpop.f32.mrf.mxu0
      %752 = vdwg.mxu0
      %p753 = scmp.ge.s32.totalorder %s604, 1
      %v754 = vadd.f32 %v679, %v590
      %v755 = vmax.f32 %v754, 0.0
      %s756 = scalar_select %p753, 1, 0
      %v757 = vstv %s756
      %vm758 = vcmp.eq.s32.totalorder %v757, 1
      %v759 = vsel %vm758, %v755, 0.0
      %s760 = sadd.s32 %s25, 1
      %s761 = smul.u32 %s760, 8
      %p762 = scmp.lt.s32.totalorder %s761, 20
      %v763 = vadd.f32 %v750, %v513
      %v764 = vmax.f32 %v763, 0.0
      %s765 = scalar_select %p762, 1, 0
      %v766 = vstv %s765
      %vm767 = vcmp.eq.s32.totalorder %v766, 1
      %v768 = vsel %vm767, %v764, 0.0
      %769 = vst [vmem:[#allocation2 + $0x8] sm:$0xff] %v610
      %770 = vst [vmem:[#allocation2] sm:$0x80] %v759
      %771 = vst [vmem:[#allocation2 + $0x10] sm:$0x1] %v768
      %v772 = vld [vmem:[#allocation2 + $0x8] sm:$0xff]
      %s773 = scalar_lea.vmem %s4, 128
      %v774 = vld [vmem:[%s773] sm:$0xff]
      %v775 = vld [vmem:[%s773 + $0x8] sm:$0xff]
      %v776 = vld [vmem:[%s773 + $0x10] sm:$0xff]
      %v777 = vld [vmem:[%s773 + $0x18] sm:$0xff]
      %v778 = vld [vmem:[%s773 + $0x20] sm:$0xff]
      %v779 = vld [vmem:[%s773 + $0x28] sm:$0xff]
      %v780 = vld [vmem:[%s773 + $0x30] sm:$0xff]
      %v781 = vld [vmem:[%s773 + $0x38] sm:$0xff]
      %v782 = vld [vmem:[%s773 + $0x40] sm:$0xff]
      %v783 = vld [vmem:[%s773 + $0x48] sm:$0xff]
      %v784 = vld [vmem:[%s773 + $0x50] sm:$0xff]
      %v785 = vld [vmem:[%s773 + $0x58] sm:$0xff]
      %v786 = vld [vmem:[%s773 + $0x60] sm:$0xff]
      %v787 = vld [vmem:[%s773 + $0x68] sm:$0xff]
      %v788 = vld [vmem:[%s773 + $0x70] sm:$0xff]
      %v789 = vld [vmem:[%s773 + $0x78] sm:$0xff]
      %v790 = vld [vmem:[#allocation2 + $0x7] sm:$0xff]
      %v791 = vld [vmem:[%s4] sm:$0xff]
      %v792 = vld [vmem:[%s4 + $0x8] sm:$0xff]
      %v793 = vld [vmem:[%s4 + $0x10] sm:$0xff]
      %v794 = vld [vmem:[%s4 + $0x18] sm:$0xff]
      %v795 = vld [vmem:[%s4 + $0x20] sm:$0xff]
      %v796 = vld [vmem:[%s4 + $0x28] sm:$0xff]
      %v797 = vld [vmem:[%s4 + $0x30] sm:$0xff]
      %v798 = vld [vmem:[%s4 + $0x38] sm:$0xff]
      %v799 = vld [vmem:[%s4 + $0x40] sm:$0xff]
      %v800 = vld [vmem:[%s4 + $0x48] sm:$0xff]
      %v801 = vld [vmem:[%s4 + $0x50] sm:$0xff]
      %v802 = vld [vmem:[%s4 + $0x58] sm:$0xff]
      %v803 = vld [vmem:[%s4 + $0x60] sm:$0xff]
      %v804 = vld [vmem:[%s4 + $0x68] sm:$0xff]
      %v805 = vld [vmem:[%s4 + $0x70] sm:$0xff]
      %v806 = vld [vmem:[%s4 + $0x78] sm:$0xff]
      %807 = vmatprep.subr.mxu0 0.0
      %808 = vmatpush1.msra.mxu0 %v806
      %809 = vmatprep.subr.mxu0 0.0
      %810 = vmatpush1.msra.mxu0 %v805
      %811 = vmatprep.subr.mxu0 0.0
      %812 = vmatpush1.msra.mxu0 %v804
      %813 = vmatprep.subr.mxu0 0.0
      %814 = vmatpush1.msra.mxu0 %v803
      %815 = vmatprep.subr.mxu0 0.0
      %816 = vmatpush1.msra.mxu0 %v802
      %817 = vmatprep.subr.mxu0 0.0
      %818 = vmatpush1.msra.mxu0 %v801
      %819 = vmatprep.subr.mxu0 0.0
      %820 = vmatpush1.msra.mxu0 %v800
      %821 = vmatprep.subr.mxu0 0.0
      %822 = vmatpush1.msra.mxu0 %v799
      %823 = vmatprep.subr.mxu0 0.0
      %824 = vmatpush1.msra.mxu0 %v798
      %825 = vmatprep.subr.mxu0 0.0
      %826 = vmatpush1.msra.mxu0 %v797
      %827 = vmatprep.subr.mxu0 0.0
      %828 = vmatpush1.msra.mxu0 %v796
      %829 = vmatprep.subr.mxu0 0.0
      %830 = vmatpush1.msra.mxu0 %v795
      %831 = vmatprep.subr.mxu0 0.0
      %832 = vmatpush1.msra.mxu0 %v794
      %833 = vmatprep.subr.mxu0 0.0
      %834 = vmatpush1.msra.mxu0 %v793
      %835 = vmatprep.subr.mxu0 0.0
      %836 = vmatpush1.msra.mxu0 %v792
      %837 = vmatprep.subr.mxu0 0.0
      %838 = vmatpush1.msra.mxu0 %v791
      %839 = vmatprep.subr.mxu0 0.0
      %840 = vmatpush2.msra.mxu0 0.0
      %841 = vmatprep.subr.mxu0 0.0
      %842 = vmatpush2.msra.mxu0 0.0
      %843 = vmatprep.subr.mxu0 0.0
      %844 = vmatpush2.msra.mxu0 0.0
      %845 = vmatprep.subr.mxu0 0.0
      %846 = vmatpush2.msra.mxu0 0.0
      %847 = vmatprep.subr.mxu0 0.0
      %848 = vmatpush2.msra.mxu0 0.0
      %849 = vmatprep.subr.mxu0 0.0
      %850 = vmatpush2.msra.mxu0 0.0
      %851 = vmatprep.subr.mxu0 0.0
      %852 = vmatpush2.msra.mxu0 0.0
      %853 = vmatprep.subr.mxu0 0.0
      %854 = vmatpush2.msra.mxu0 0.0
      %855 = vmatprep.subr.mxu0 0.0
      %856 = vmatpush2.msra.mxu0 0.0
      %857 = vmatprep.subr.mxu0 0.0
      %858 = vmatpush2.msra.mxu0 0.0
      %859 = vmatprep.subr.mxu0 0.0
      %860 = vmatpush2.msra.mxu0 0.0
      %861 = vmatprep.subr.mxu0 0.0
      %862 = vmatpush2.msra.mxu0 0.0
      %863 = vmatprep.subr.mxu0 0.0
      %864 = vmatpush2.msra.mxu0 0.0
      %865 = vmatprep.subr.mxu0 0.0
      %866 = vmatpush2.msra.mxu0 0.0
      %867 = vmatprep.subr.mxu0 0.0
      %868 = vmatpush2.msra.mxu0 0.0
      %869 = vmatprep.subr.mxu0 0.0
      %870 = vmatpush2.msra.mxu0 0.0
      %871 = vmatprep.mubr.f32.mxu0 0.0
      %872 = vmatmul.mubr.f32.gmra.mxu0 %v790
      %v873 = vpop.f32.mrf.mxu0
      %v874 = vadd.f32 0.0, %v873
      %v875 = vpop.f32.mrf.mxu0
      %876 = vdwg.mxu0
      %877 = vmatprep.subr.mxu0 0.0
      %878 = vmatpush1.msra.mxu0 %v789
      %879 = vmatprep.subr.mxu0 0.0
      %880 = vmatpush1.msra.mxu0 %v788
      %881 = vmatprep.subr.mxu0 0.0
      %882 = vmatpush1.msra.mxu0 %v787
      %883 = vmatprep.subr.mxu0 0.0
      %884 = vmatpush1.msra.mxu0 %v786
      %885 = vmatprep.subr.mxu0 0.0
      %886 = vmatpush1.msra.mxu0 %v785
      %887 = vmatprep.subr.mxu0 0.0
      %888 = vmatpush1.msra.mxu0 %v784
      %889 = vmatprep.subr.mxu0 0.0
      %890 = vmatpush1.msra.mxu0 %v783
      %891 = vmatprep.subr.mxu0 0.0
      %892 = vmatpush1.msra.mxu0 %v782
      %893 = vmatprep.subr.mxu0 0.0
      %894 = vmatpush1.msra.mxu0 %v781
      %895 = vmatprep.subr.mxu0 0.0
      %896 = vmatpush1.msra.mxu0 %v780
      %897 = vmatprep.subr.mxu0 0.0
      %898 = vmatpush1.msra.mxu0 %v779
      %899 = vmatprep.subr.mxu0 0.0
      %900 = vmatpush1.msra.mxu0 %v778
      %901 = vmatprep.subr.mxu0 0.0
      %902 = vmatpush1.msra.mxu0 %v777
      %903 = vmatprep.subr.mxu0 0.0
      %904 = vmatpush1.msra.mxu0 %v776
      %905 = vmatprep.subr.mxu0 0.0
      %906 = vmatpush1.msra.mxu0 %v775
      %907 = vmatprep.subr.mxu0 0.0
      %908 = vmatpush1.msra.mxu0 %v774
      %909 = vmatprep.subr.mxu0 0.0
      %910 = vmatpush2.msra.mxu0 0.0
      %911 = vmatprep.subr.mxu0 0.0
      %912 = vmatpush2.msra.mxu0 0.0
      %913 = vmatprep.subr.mxu0 0.0
      %914 = vmatpush2.msra.mxu0 0.0
      %915 = vmatprep.subr.mxu0 0.0
      %916 = vmatpush2.msra.mxu0 0.0
      %917 = vmatprep.subr.mxu0 0.0
      %918 = vmatpush2.msra.mxu0 0.0
      %919 = vmatprep.subr.mxu0 0.0
      %920 = vmatpush2.msra.mxu0 0.0
      %921 = vmatprep.subr.mxu0 0.0
      %922 = vmatpush2.msra.mxu0 0.0
      %923 = vmatprep.subr.mxu0 0.0
      %924 = vmatpush2.msra.mxu0 0.0
      %925 = vmatprep.subr.mxu0 0.0
      %926 = vmatpush2.msra.mxu0 0.0
      %927 = vmatprep.subr.mxu0 0.0
      %928 = vmatpush2.msra.mxu0 0.0
      %929 = vmatprep.subr.mxu0 0.0
      %930 = vmatpush2.msra.mxu0 0.0
      %931 = vmatprep.subr.mxu0 0.0
      %932 = vmatpush2.msra.mxu0 0.0
      %933 = vmatprep.subr.mxu0 0.0
      %934 = vmatpush2.msra.mxu0 0.0
      %935 = vmatprep.subr.mxu0 0.0
      %936 = vmatpush2.msra.mxu0 0.0
      %937 = vmatprep.subr.mxu0 0.0
      %938 = vmatpush2.msra.mxu0 0.0
      %939 = vmatprep.subr.mxu0 0.0
      %940 = vmatpush2.msra.mxu0 0.0
      %941 = vmatprep.mubr.f32.mxu0 0.0
      %942 = vmatmul.mubr.f32.gmra.mxu0 %v772
      %v943 = vpop.f32.mrf.mxu0
      %v944 = vadd.f32 %v874, %v943
      %v945 = vpop.f32.mrf.mxu0
      %946 = vdwg.mxu0
      %v947 = vld [vmem:[#allocation2 + $0x9] sm:$0xff]
      %s948 = scalar_lea.vmem %s4, 256
      %v949 = vld [vmem:[%s948] sm:$0xff]
      %v950 = vld [vmem:[%s948 + $0x8] sm:$0xff]
      %v951 = vld [vmem:[%s948 + $0x10] sm:$0xff]
      %v952 = vld [vmem:[%s948 + $0x18] sm:$0xff]
      %v953 = vld [vmem:[%s948 + $0x20] sm:$0xff]
      %v954 = vld [vmem:[%s948 + $0x28] sm:$0xff]
      %v955 = vld [vmem:[%s948 + $0x30] sm:$0xff]
      %v956 = vld [vmem:[%s948 + $0x38] sm:$0xff]
      %v957 = vld [vmem:[%s948 + $0x40] sm:$0xff]
      %v958 = vld [vmem:[%s948 + $0x48] sm:$0xff]
      %v959 = vld [vmem:[%s948 + $0x50] sm:$0xff]
      %v960 = vld [vmem:[%s948 + $0x58] sm:$0xff]
      %v961 = vld [vmem:[%s948 + $0x60] sm:$0xff]
      %v962 = vld [vmem:[%s948 + $0x68] sm:$0xff]
      %v963 = vld [vmem:[%s948 + $0x70] sm:$0xff]
      %v964 = vld [vmem:[%s948 + $0x78] sm:$0xff]
      %965 = vmatprep.subr.mxu0 0.0
      %966 = vmatpush1.msra.mxu0 %v964
      %967 = vmatprep.subr.mxu0 0.0
      %968 = vmatpush1.msra.mxu0 %v963
      %969 = vmatprep.subr.mxu0 0.0
      %970 = vmatpush1.msra.mxu0 %v962
      %971 = vmatprep.subr.mxu0 0.0
      %972 = vmatpush1.msra.mxu0 %v961
      %973 = vmatprep.subr.mxu0 0.0
      %974 = vmatpush1.msra.mxu0 %v960
      %975 = vmatprep.subr.mxu0 0.0
      %976 = vmatpush1.msra.mxu0 %v959
      %977 = vmatprep.subr.mxu0 0.0
      %978 = vmatpush1.msra.mxu0 %v958
      %979 = vmatprep.subr.mxu0 0.0
      %980 = vmatpush1.msra.mxu0 %v957
      %981 = vmatprep.subr.mxu0 0.0
      %982 = vmatpush1.msra.mxu0 %v956
      %983 = vmatprep.subr.mxu0 0.0
      %984 = vmatpush1.msra.mxu0 %v955
      %985 = vmatprep.subr.mxu0 0.0
      %986 = vmatpush1.msra.mxu0 %v954
      %987 = vmatprep.subr.mxu0 0.0
      %988 = vmatpush1.msra.mxu0 %v953
      %989 = vmatprep.subr.mxu0 0.0
      %990 = vmatpush1.msra.mxu0 %v952
      %991 = vmatprep.subr.mxu0 0.0
      %992 = vmatpush1.msra.mxu0 %v951
      %993 = vmatprep.subr.mxu0 0.0
      %994 = vmatpush1.msra.mxu0 %v950
      %995 = vmatprep.subr.mxu0 0.0
      %996 = vmatpush1.msra.mxu0 %v949
      %997 = vmatprep.subr.mxu0 0.0
      %998 = vmatpush2.msra.mxu0 0.0
      %999 = vmatprep.subr.mxu0 0.0
      %1000 = vmatpush2.msra.mxu0 0.0
      %1001 = vmatprep.subr.mxu0 0.0
      %1002 = vmatpush2.msra.mxu0 0.0
      %1003 = vmatprep.subr.mxu0 0.0
      %1004 = vmatpush2.msra.mxu0 0.0
      %1005 = vmatprep.subr.mxu0 0.0
      %1006 = vmatpush2.msra.mxu0 0.0
      %1007 = vmatprep.subr.mxu0 0.0
      %1008 = vmatpush2.msra.mxu0 0.0
      %1009 = vmatprep.subr.mxu0 0.0
      %1010 = vmatpush2.msra.mxu0 0.0
      %1011 = vmatprep.subr.mxu0 0.0
      %1012 = vmatpush2.msra.mxu0 0.0
      %1013 = vmatprep.subr.mxu0 0.0
      %1014 = vmatpush2.msra.mxu0 0.0
      %1015 = vmatprep.subr.mxu0 0.0
      %1016 = vmatpush2.msra.mxu0 0.0
      %1017 = vmatprep.subr.mxu0 0.0
      %1018 = vmatpush2.msra.mxu0 0.0
      %1019 = vmatprep.subr.mxu0 0.0
      %1020 = vmatpush2.msra.mxu0 0.0
      %1021 = vmatprep.subr.mxu0 0.0
      %1022 = vmatpush2.msra.mxu0 0.0
      %1023 = vmatprep.subr.mxu0 0.0
      %1024 = vmatpush2.msra.mxu0 0.0
      %1025 = vmatprep.subr.mxu0 0.0
      %1026 = vmatpush2.msra.mxu0 0.0
      %1027 = vmatprep.subr.mxu0 0.0
      %1028 = vmatpush2.msra.mxu0 0.0
      %1029 = vmatprep.mubr.f32.mxu0 0.0
      %1030 = vmatmul.mubr.f32.gmra.mxu0 %v947
      %v1031 = vpop.f32.mrf.mxu0
      %v1032 = vadd.f32 0.0, %v1031
      %v1033 = vpop.f32.mrf.mxu0
      %1034 = vdwg.mxu0
      %v1035 = vadd.f32 %v944, %v1032
      %v1036 = vld [vmem:[%s7] sm:$0x1]
      %v1038 = vlaneseq
      %v1039 = vshrl.u32 %v1038, 7
      %v1040 = vsub.s32 0, %v1039
      %v1041 = vrot.slane %v1036, %v1040
      %v1043 = vadd.f32 %v1035, %v1041
      %v1044 = vmax.f32 %v1043, 0.0
      %v1045 = vld [vmem:[%s5] sm:$0xff]
      %v1046 = vld [vmem:[%s5 + $0x8] sm:$0xff]
      %v1047 = vld [vmem:[%s5 + $0x10] sm:$0xff]
      %v1048 = vld [vmem:[%s5 + $0x18] sm:$0xff]
      %v1049 = vld [vmem:[%s5 + $0x20] sm:$0xff]
      %v1050 = vld [vmem:[%s5 + $0x28] sm:$0xff]
      %v1051 = vld [vmem:[%s5 + $0x30] sm:$0xff]
      %v1052 = vld [vmem:[%s5 + $0x38] sm:$0xff]
      %v1053 = vld [vmem:[%s5 + $0x40] sm:$0xff]
      %v1054 = vld [vmem:[%s5 + $0x48] sm:$0xff]
      %v1055 = vld [vmem:[%s5 + $0x50] sm:$0xff]
      %v1056 = vld [vmem:[%s5 + $0x58] sm:$0xff]
      %v1057 = vld [vmem:[%s5 + $0x60] sm:$0xff]
      %v1058 = vld [vmem:[%s5 + $0x68] sm:$0xff]
      %v1059 = vld [vmem:[%s5 + $0x70] sm:$0xff]
      %v1060 = vld [vmem:[%s5 + $0x78] sm:$0xff]
      %v1061 = vld [vmem:[%s8] sm:$0x1]
      %v1063 = vlaneseq
      %v1064 = vshrl.u32 %v1063, 7
      %v1065 = vsub.s32 0, %v1064
      %v1066 = vrot.slane %v1061, %v1065
      %1068 = vmatprep.subr.mxu0 0.0
      %1069 = vmatpush1.msra.mxu0 %v1060
      %1070 = vmatprep.subr.mxu0 0.0
      %1071 = vmatpush1.msra.mxu0 %v1059
      %1072 = vmatprep.subr.mxu0 0.0
      %1073 = vmatpush1.msra.mxu0 %v1058
      %1074 = vmatprep.subr.mxu0 0.0
      %1075 = vmatpush1.msra.mxu0 %v1057
      %1076 = vmatprep.subr.mxu0 0.0
      %1077 = vmatpush1.msra.mxu0 %v1056
      %1078 = vmatprep.subr.mxu0 0.0
      %1079 = vmatpush1.msra.mxu0 %v1055
      %1080 = vmatprep.subr.mxu0 0.0
      %1081 = vmatpush1.msra.mxu0 %v1054
      %1082 = vmatprep.subr.mxu0 0.0
      %1083 = vmatpush1.msra.mxu0 %v1053
      %1084 = vmatprep.subr.mxu0 0.0
      %1085 = vmatpush1.msra.mxu0 %v1052
      %1086 = vmatprep.subr.mxu0 0.0
      %1087 = vmatpush1.msra.mxu0 %v1051
      %1088 = vmatprep.subr.mxu0 0.0
      %1089 = vmatpush1.msra.mxu0 %v1050
      %1090 = vmatprep.subr.mxu0 0.0
      %1091 = vmatpush1.msra.mxu0 %v1049
      %1092 = vmatprep.subr.mxu0 0.0
      %1093 = vmatpush1.msra.mxu0 %v1048
      %1094 = vmatprep.subr.mxu0 0.0
      %1095 = vmatpush1.msra.mxu0 %v1047
      %1096 = vmatprep.subr.mxu0 0.0
      %1097 = vmatpush1.msra.mxu0 %v1046
      %1098 = vmatprep.subr.mxu0 0.0
      %1099 = vmatpush1.msra.mxu0 %v1045
      %1100 = vmatprep.subr.mxu0 0.0
      %1101 = vmatpush2.msra.mxu0 0.0
      %1102 = vmatprep.subr.mxu0 0.0
      %1103 = vmatpush2.msra.mxu0 0.0
      %1104 = vmatprep.subr.mxu0 0.0
      %1105 = vmatpush2.msra.mxu0 0.0
      %1106 = vmatprep.subr.mxu0 0.0
      %1107 = vmatpush2.msra.mxu0 0.0
      %1108 = vmatprep.subr.mxu0 0.0
      %1109 = vmatpush2.msra.mxu0 0.0
      %1110 = vmatprep.subr.mxu0 0.0
      %1111 = vmatpush2.msra.mxu0 0.0
      %1112 = vmatprep.subr.mxu0 0.0
      %1113 = vmatpush2.msra.mxu0 0.0
      %1114 = vmatprep.subr.mxu0 0.0
      %1115 = vmatpush2.msra.mxu0 0.0
      %1116 = vmatprep.subr.mxu0 0.0
      %1117 = vmatpush2.msra.mxu0 0.0
      %1118 = vmatprep.subr.mxu0 0.0
      %1119 = vmatpush2.msra.mxu0 0.0
      %1120 = vmatprep.subr.mxu0 0.0
      %1121 = vmatpush2.msra.mxu0 0.0
      %1122 = vmatprep.subr.mxu0 0.0
      %1123 = vmatpush2.msra.mxu0 0.0
      %1124 = vmatprep.subr.mxu0 0.0
      %1125 = vmatpush2.msra.mxu0 0.0
      %1126 = vmatprep.subr.mxu0 0.0
      %1127 = vmatpush2.msra.mxu0 0.0
      %1128 = vmatprep.subr.mxu0 0.0
      %1129 = vmatpush2.msra.mxu0 0.0
      %1130 = vmatprep.subr.mxu0 0.0
      %1131 = vmatpush2.msra.mxu0 0.0
      %1132 = vmatprep.mubr.f32.mxu0 0.0
      %1133 = vmatmul.mubr.f32.gmra.mxu0 %v1044
      %v1134 = vpop.f32.mrf.mxu0
      %v1135 = vadd.f32 %v1066, %v1134
      %v1136 = vpop.f32.mrf.mxu0
      %1137 = vdwg.mxu0
      %v1138 = vmax.f32 %v1135, 0.0
      %v1139 = vadd.f32 %v1138, %v601
      %1140 = vst [vmem:[%s480] sm:$0xff] %v1139
      %p1141 = scmp.lt.s32.totalorder %s26, 1
      %s1142 = scalar_select %p1141, %s26, 1
      %p1143 = scmp.lt.s32.totalorder %s25, 2
      %s1144 = scalar_select %p1143, %s25, 2
      %s1145 = smul.addr %s1142, 3
      %s1146 = sadd.s32 %s1144, %s1145
      %s1147 = smul.addr %s1146, 8
      %s1148 = scalar_lea.vmem %s10, %s1147
      // Predicated region
      $region61: #{_bottleneck_forward.1} parent=59 // pred_check
        %p1149 = pneg %p292
      $region62: #{_bottleneck_forward.1} parent=59 // pred_check_branch
        %1151 = sbr.rel (%p1149) target = $region64
      $region63: #{_bottleneck_forward.1} parent=59 // pred_region
        _
      $region64: #{_bottleneck_forward.1} parent=59 // pred_fallthru
        _
    $region60: #{_bottleneck_forward.1} parent=5 // pred_fallthru
      _
    %p1152 = scmp.le.s32.totalorder 2, %s16
    // Predicated region
    $region65: #{_bottleneck_forward.1} parent=5 // pred_check
      %p1153 = pneg %p1152
    $region66: #{_bottleneck_forward.1} parent=5 // pred_check_branch
      %1155 = sbr.rel (%p1153) target = $region68
    $region67: #{_bottleneck_forward.1} parent=5 // pred_region
      %s1156 = ssub.s32 %s16, 2
      // Predicated region
      $region69: #{_bottleneck_forward.1} parent=67 // pred_check
        %p1157 = pneg %p298
      $region70: #{_bottleneck_forward.1} parent=67 // pred_check_branch
        %1159 = sbr.rel (%p1157) target = $region72
      $region71: #{_bottleneck_forward.1} parent=67 // pred_region
        %p1160 = scmp.lt.s32.totalorder %s28, 1
        %s1161 = scalar_select %p1160, %s28, 1
        %p1162 = scmp.lt.s32.totalorder %s27, 2
        %s1163 = scalar_select %p1162, %s27, 2
        %s1164 = smul.addr %s1161, 3
        %s1165 = sadd.s32 %s1163, %s1164
        %s1166 = smul.addr %s1165, 8
        %s1167 = scalar_lea.vmem %s10, %s1166
      $region72: #{_bottleneck_forward.1} parent=67 // pred_fallthru
        _
    $region68: #{_bottleneck_forward.1} parent=5 // pred_fallthru
      _
  $region6: #{_bottleneck_forward.1} parent=0 // loop_footer
    %s20 = sadd.s32 1, %s16
  $region7: #{_bottleneck_forward.1} parent=0 // loop_footer_branch
    %15 = sbr.rel target = $region3
  $region8: #{_bottleneck_forward.1} parent=0 // loop_exit
    _

</llo_original>
